<compile_context>
chip_gen: v7x
topology: tpu7x:2x2x1
jax: 0.10.0
libtpu: 0.0.40
codegen_flags: <defaults>
</compile_context>

<pallas_src>
import functools

import jax
import jax.numpy as jnp
from jax.experimental import pallas as pl
from jax.experimental.pallas import tpu as pltpu


def _round_up(x, m):
    return ((x + m - 1) // m) * m


def _discriminator_kernel(x_ref, w1_ref, b1_ref, w2_ref, b2_ref,
                          w3_ref, b3_ref, o_ref, *, lane_dense):
    """One batch tile: 2 MXU matmuls + VPU/XLU final layer + EUP sigmoid."""
    # x arrives unpadded f32; cast to bf16 right before the MXU (the wrapper no
    # longer spends an extra HBM pass on a padded bf16 copy of x).
    x = x_ref[...].astype(jnp.bfloat16)                                 # (TM, 784)

    # Linear 1 + LeakyReLU(0.2)  (bf16 x bf16 -> f32 acc on the MXU; the
    # K=784 contraction is unaligned, Mosaic masks the padded lanes).
    h1 = jnp.dot(x, w1_ref[...], preferred_element_type=jnp.float32)    # (TM, 512)
    h1 = h1 + b1_ref[...]
    h1 = jnp.maximum(h1, 0.2 * h1)                                       # 2 VPU ops

    # Linear 2 + LeakyReLU(0.2)
    h2 = jnp.dot(h1.astype(jnp.bfloat16), w2_ref[...],
                 preferred_element_type=jnp.float32)                     # (TM, 256)
    h2 = h2 + b2_ref[...]
    h2 = jnp.maximum(h2, 0.2 * h2)

    # Linear 3 (K=256, N=1) stays off the MXU (it would use 1 of 256 columns).
    if lane_dense:
        # Lane-dense epilogue: TM and 256 are both (8,128)-aligned here, so the
        # XLU transpose + lane-broadcast + sublane reduce are all native.
        h2t = h2.T                                                       # (256, TM)
        logits = jnp.sum(h2t * w3_ref[...], axis=0, keepdims=True)       # (1, TM)
        logits = logits + b3_ref[0, 0]                                   # SMEM scalar
        # sigmoid(z) = 0.5*(tanh(z/2)+1): one EUP op, exact [0, 1] range.
        o_ref[0] = 0.5 * (jnp.tanh(0.5 * logits) + 1.0)
    else:
        # Small single-tile batches: (TM, 1) column output; lane density is
        # irrelevant at this size.
        logits = jnp.sum(h2 * w3_ref[...], axis=-1, keepdims=True)       # (TM, 1)
        logits = logits + b3_ref[0, 0]
        o_ref[...] = 0.5 * (jnp.tanh(0.5 * logits) + 1.0)


def discriminator_forward(x_nchw, params, *, tm=512):
    """x_nchw: (B, C, H, W) float32.  Returns (B, 1) float32 in [0, 1]."""
    B = x_nchw.shape[0]
    D = x_nchw.shape[1] * x_nchw.shape[2] * x_nchw.shape[3]
    x = x_nchw.reshape(B, D).astype(jnp.float32)       # == x.view(B, C*H*W)

    w1, b1, w2, b2, w3, b3 = params
    H1 = w1.shape[1]
    H2 = w2.shape[1]

    # ---- batch tile selection ---------------------------------------------
    tm = max(128, (tm // 128) * 128)                   # keep the cap a 128-multiple
    if B >= 256:
        # Large batches: 128-multiple tile (full MXU rows on v6e/v7x,
        # lane-dense output) and always >= 2 grid steps for the two v7x TCs.
        tm_eff = min(tm, _round_up(B // 2, 128))
    else:
        # Small batches: don't pad B=8/64 up to a full 128/256-row tile.
        tm_eff = _round_up(B, 16)
    Bp = _round_up(B, tm_eff)
    n_tiles = Bp // tm_eff
    lane_dense = (tm_eff % 128 == 0)

    if Bp != B:
        x = jnp.pad(x, ((0, Bp - B), (0, 0)))          # exact zero rows, sliced off

    # ---- one-time weight prep (tiny) ----------------------------------------
    w1_bf = w1.astype(jnp.bfloat16)                    # (784, 512)
    w2_bf = w2.astype(jnp.bfloat16)                    # (512, 256)
    b1_r = b1.reshape(1, -1).astype(jnp.float32)       # (1, 512)
    b2_r = b2.reshape(1, -1).astype(jnp.float32)       # (1, 256)
    b3_s = b3.reshape(1, 1).astype(jnp.float32)        # (1, 1) -> SMEM scalar

    if lane_dense:
        w3_k = w3.reshape(-1, 1).astype(jnp.float32)   # (256, 1) column, f32 on VPU
        w3_spec = pl.BlockSpec((H2, 1), lambda i: (0, 0))
        out_shape = jax.ShapeDtypeStruct((n_tiles, 1, tm_eff), jnp.float32)
        out_spec = pl.BlockSpec((1, 1, tm_eff), lambda i: (i, 0, 0))
    else:
        w3_k = w3.reshape(1, -1).astype(jnp.float32)   # (1, 256) row
        w3_spec = pl.BlockSpec((1, H2), lambda i: (0, 0))
        out_shape = jax.ShapeDtypeStruct((Bp, 1), jnp.float32)
        out_spec = pl.BlockSpec((tm_eff, 1), lambda i: (i, 0))

    cost = pl.CostEstimate(
        flops=2 * Bp * (D * H1 + H1 * H2 + H2),
        transcendentals=Bp,
        bytes_accessed=(x.size * 4 + w1_bf.size * 2 + w2_bf.size * 2
                        + w3_k.size * 4 + b1_r.size * 4 + b2_r.size * 4 + 4
                        + Bp * 4),
    )

    out = pl.pallas_call(
        functools.partial(_discriminator_kernel, lane_dense=lane_dense),
        out_shape=out_shape,
        grid_spec=pltpu.PrefetchScalarGridSpec(
            num_scalar_prefetch=0,
            grid=(n_tiles,),
            in_specs=[
                # x: one f32 tile streamed per step (last block dim == full 784).
                # Note: on v7x, pipeline_mode=pl.Buffered(3) here can hide
                # 2-TC HBM contention if a trace shows the x DMA exposed.
                pl.BlockSpec((tm_eff, D), lambda i: (i, 0)),
                pl.BlockSpec((D, H1), lambda i: (0, 0)),     # w1: VMEM-resident
                pl.BlockSpec((1, H1), lambda i: (0, 0)),     # b1: resident
                pl.BlockSpec((H1, H2), lambda i: (0, 0)),    # w2: resident
                pl.BlockSpec((1, H2), lambda i: (0, 0)),     # b2: resident
                w3_spec,                                     # w3: resident
                pl.BlockSpec(memory_space=pltpu.MemorySpace.SMEM),  # b3 scalar
            ],
            out_specs=out_spec,
        ),
        compiler_params=pltpu.CompilerParams(
            dimension_semantics=("parallel",)),
        cost_estimate=cost,
    )(x, w1_bf, b1_r, w2_bf, b2_r, w3_k, b3_s)

    return out.reshape(Bp, 1)[:B]


def discriminator_reference(x_nchw, params):
    """Plain-JAX f32 reference of the PyTorch forward (loose-tolerance check)."""
    w1, b1, w2, b2, w3, b3 = params
    x = x_nchw.reshape(x_nchw.shape[0], -1).astype(jnp.float32)
    h = x @ w1 + b1.reshape(1, -1)
    h = jnp.where(h > 0, h, 0.2 * h)
    h = h @ w2 + b2.reshape(1, -1)
    h = jnp.where(h > 0, h, 0.2 * h)
    z = h @ w3 + b3.reshape(1, -1)
    return jax.nn.sigmoid(z)


def init_params(key, in_dim):
    """Deterministic PyTorch-style init: U(-1/sqrt(fan_in), 1/sqrt(fan_in)).
    Weights are stored (in, out) so the kernel does x @ W."""
    dims = [(in_dim, 512), (512, 256), (256, 1)]
    params = []
    for i, (fan_in, fan_out) in enumerate(dims):
        kw, kb = jax.random.split(jax.random.fold_in(key, i))
        bound = 1.0 / jnp.sqrt(jnp.float32(fan_in))
        w = jax.random.uniform(kw, (fan_in, fan_out), jnp.float32, -bound, bound)
        b = jax.random.uniform(kb, (1, fan_out), jnp.float32, -bound, bound)
        params += [w, b]
    return tuple(params)


if __name__ == "__main__":
    key = jax.random.PRNGKey(0)
    k_x1, k_x2, k_p = jax.random.split(key, 3)

    # MNIST-consistent shapes: C=1, H=W=28 -> D=784.
    C, H, W = 1, 28, 28
    params = init_params(k_p, C * H * W)

    # 1) Module-default batch (64): adaptive small-batch tile, single grid step.
    x_small = jax.random.normal(k_x1, (64, C, H, W), jnp.float32)
    out_small = jax.block_until_ready(discriminator_forward(x_small, params))
    ref_small = discriminator_reference(x_small, params)
    assert out_small.shape == (64, 1)
    assert bool(jnp.all((out_small >= 0.0) & (out_small <= 1.0)))
    # bf16 matmul tolerance vs the f32 reference (documented deviation ~1e-2 rel).
    assert float(jnp.max(jnp.abs(out_small - ref_small))) < 2e-2

    # 2) Larger batch (256): 2 x 128-row tiles, lane-dense output path
    #    (exercises the multi-tile / both-TensorCore configuration).
    x_big = jax.random.normal(k_x2, (256, C, H, W), jnp.float32)
    out_big = jax.block_until_ready(discriminator_forward(x_big, params))
    ref_big = discriminator_reference(x_big, params)
    assert out_big.shape == (256, 1)
    assert bool(jnp.all((out_big >= 0.0) & (out_big <= 1.0)))
    assert float(jnp.max(jnp.abs(out_big - ref_big))) < 2e-2

    print("KERNEL_OK")
</pallas_src>

<mosaic_0001>
module attributes {stable_mosaic.version = 11 : i64} {
  func.func @_discriminator_kernel(%arg0: i32, %arg1: memref<64x784xf32, #tpu.memory_space<vmem>>, %arg2: memref<784x512xbf16, #tpu.memory_space<vmem>>, %arg3: memref<1x512xf32, #tpu.memory_space<vmem>>, %arg4: memref<512x256xbf16, #tpu.memory_space<vmem>>, %arg5: memref<1x256xf32, #tpu.memory_space<vmem>>, %arg6: memref<1x256xf32, #tpu.memory_space<vmem>>, %arg7: memref<1x1xf32, #tpu.memory_space<smem>>, %arg8: memref<64x1xf32, #tpu.memory_space<vmem>>) attributes {dimension_semantics = [#tpu.dimension_semantics<parallel>], iteration_bounds = array<i64: 1>, scalar_prefetch = 0 : i64, scratch_operands = 0 : i64, tpu.core_type = #tpu.core_type<tc>, window_params = [{transform_indices = @transform_0, window_bounds = array<i64: 64, 784>}, {pipeline_mode = #tpu.pipeline_mode<synchronous>, transform_indices = @transform_1, window_bounds = array<i64: 784, 512>}, {pipeline_mode = #tpu.pipeline_mode<synchronous>, transform_indices = @transform_2, window_bounds = array<i64: 1, 512>}, {pipeline_mode = #tpu.pipeline_mode<synchronous>, transform_indices = @transform_3, window_bounds = array<i64: 512, 256>}, {pipeline_mode = #tpu.pipeline_mode<synchronous>, transform_indices = @transform_4, window_bounds = array<i64: 1, 256>}, {pipeline_mode = #tpu.pipeline_mode<synchronous>, transform_indices = @transform_5, window_bounds = array<i64: 1, 256>}, {transform_indices = @transform_6, window_bounds = array<i64: 1, 1>}, {transform_indices = @transform_7, window_bounds = array<i64: 64, 1>}]} {
    %c0 = arith.constant 0 : index
    %c0_0 = arith.constant 0 : index
    %0 = vector.load %arg1[%c0, %c0_0] : memref<64x784xf32, #tpu.memory_space<vmem>>, vector<64x784xf32>
    %1 = arith.truncf %0 : vector<64x784xf32> to vector<64x784xbf16>
    %c0_1 = arith.constant 0 : index
    %c0_2 = arith.constant 0 : index
    %2 = vector.load %arg2[%c0_1, %c0_2] : memref<784x512xbf16, #tpu.memory_space<vmem>>, vector<784x512xbf16>
    %cst = arith.constant dense<0.000000e+00> : vector<64x512xf32>
    %3 = tpu.matmul %1, %2, %cst {dimension_numbers = #tpu.dot_dimension_numbers<[1], [0], [0], [1], [0, 0, 1, 1], [], []>} : vector<64x784xbf16>, vector<784x512xbf16>, vector<64x512xf32> -> vector<64x512xf32>
    %c0_3 = arith.constant 0 : index
    %c0_4 = arith.constant 0 : index
    %4 = vector.load %arg3[%c0_3, %c0_4] : memref<1x512xf32, #tpu.memory_space<vmem>>, vector<1x512xf32>
    %5 = vector.broadcast %4 : vector<1x512xf32> to vector<64x512xf32>
    %6 = arith.addf %3, %5 : vector<64x512xf32>
    %cst_5 = arith.constant 2.000000e-01 : f32
    %7 = vector.broadcast %cst_5 : f32 to vector<64x512xf32>
    %8 = arith.mulf %7, %6 : vector<64x512xf32>
    %9 = arith.maximumf %6, %8 : vector<64x512xf32>
    %10 = arith.truncf %9 : vector<64x512xf32> to vector<64x512xbf16>
    %c0_6 = arith.constant 0 : index
    %c0_7 = arith.constant 0 : index
    %11 = vector.load %arg4[%c0_6, %c0_7] : memref<512x256xbf16, #tpu.memory_space<vmem>>, vector<512x256xbf16>
    %cst_8 = arith.constant dense<0.000000e+00> : vector<64x256xf32>
    %12 = tpu.matmul %10, %11, %cst_8 {dimension_numbers = #tpu.dot_dimension_numbers<[1], [0], [0], [1], [0, 0, 1, 1], [], []>} : vector<64x512xbf16>, vector<512x256xbf16>, vector<64x256xf32> -> vector<64x256xf32>
    %c0_9 = arith.constant 0 : index
    %c0_10 = arith.constant 0 : index
    %13 = vector.load %arg5[%c0_9, %c0_10] : memref<1x256xf32, #tpu.memory_space<vmem>>, vector<1x256xf32>
    %14 = vector.broadcast %13 : vector<1x256xf32> to vector<64x256xf32>
    %15 = arith.addf %12, %14 : vector<64x256xf32>
    %cst_11 = arith.constant 2.000000e-01 : f32
    %16 = vector.broadcast %cst_11 : f32 to vector<64x256xf32>
    %17 = arith.mulf %16, %15 : vector<64x256xf32>
    %18 = arith.maximumf %15, %17 : vector<64x256xf32>
    %c0_12 = arith.constant 0 : index
    %c0_13 = arith.constant 0 : index
    %19 = vector.load %arg6[%c0_12, %c0_13] : memref<1x256xf32, #tpu.memory_space<vmem>>, vector<1x256xf32>
    %20 = vector.broadcast %19 : vector<1x256xf32> to vector<64x256xf32>
    %21 = arith.mulf %18, %20 : vector<64x256xf32>
    %cst_14 = arith.constant dense<0.000000e+00> : vector<64xf32>
    %22 = vector.multi_reduction <add>, %21, %cst_14 [1] : vector<64x256xf32> to vector<64xf32>
    %23 = vector.shape_cast %22 : vector<64xf32> to vector<64x1xf32>
    %c0_15 = arith.constant 0 : index
    %c0_16 = arith.constant 0 : index
    %24 = memref.load %arg7[%c0_15, %c0_16] : memref<1x1xf32, #tpu.memory_space<smem>>
    %25 = vector.broadcast %24 : f32 to vector<64x1xf32>
    %26 = arith.addf %23, %25 : vector<64x1xf32>
    %cst_17 = arith.constant 5.000000e-01 : f32
    %27 = vector.broadcast %cst_17 : f32 to vector<64x1xf32>
    %28 = arith.mulf %27, %26 : vector<64x1xf32>
    %29 = math.tanh %28 : vector<64x1xf32>
    %cst_18 = arith.constant 1.000000e+00 : f32
    %30 = vector.broadcast %cst_18 : f32 to vector<64x1xf32>
    %31 = arith.addf %29, %30 : vector<64x1xf32>
    %cst_19 = arith.constant 5.000000e-01 : f32
    %32 = vector.broadcast %cst_19 : f32 to vector<64x1xf32>
    %33 = arith.mulf %32, %31 : vector<64x1xf32>
    %c0_20 = arith.constant 0 : index
    %c0_21 = arith.constant 0 : index
    %34 = vector.load %arg8[%c0_20, %c0_21] : memref<64x1xf32, #tpu.memory_space<vmem>>, vector<64x1xf32>
    tpu.vector_store %arg8[%c0_20, %c0_21], %33 {strides = array<i32>} : memref<64x1xf32, #tpu.memory_space<vmem>>, vector<64x1xf32>,
    return
  }
  func.func @transform_0(%arg0: i32) -> (i32, i32) {
    %c0_i32 = arith.constant 0 : i32
    %c0_i32_0 = arith.constant 0 : i32
    return %arg0, %c0_i32 : i32, i32
  }
  func.func @transform_1(%arg0: i32) -> (i32, i32) {
    %c0_i32 = arith.constant 0 : i32
    %c0_i32_0 = arith.constant 0 : i32
    %c0_i32_1 = arith.constant 0 : i32
    return %c0_i32, %c0_i32_0 : i32, i32
  }
  func.func @transform_2(%arg0: i32) -> (i32, i32) {
    %c0_i32 = arith.constant 0 : i32
    %c0_i32_0 = arith.constant 0 : i32
    %c0_i32_1 = arith.constant 0 : i32
    return %c0_i32, %c0_i32_0 : i32, i32
  }
  func.func @transform_3(%arg0: i32) -> (i32, i32) {
    %c0_i32 = arith.constant 0 : i32
    %c0_i32_0 = arith.constant 0 : i32
    %c0_i32_1 = arith.constant 0 : i32
    return %c0_i32, %c0_i32_0 : i32, i32
  }
  func.func @transform_4(%arg0: i32) -> (i32, i32) {
    %c0_i32 = arith.constant 0 : i32
    %c0_i32_0 = arith.constant 0 : i32
    %c0_i32_1 = arith.constant 0 : i32
    return %c0_i32, %c0_i32_0 : i32, i32
  }
  func.func @transform_5(%arg0: i32) -> (i32, i32) {
    %c0_i32 = arith.constant 0 : i32
    %c0_i32_0 = arith.constant 0 : i32
    %c0_i32_1 = arith.constant 0 : i32
    return %c0_i32, %c0_i32_0 : i32, i32
  }
  func.func @transform_6(%arg0: i32) -> (i32, i32) {
    %c0_i32 = arith.constant 0 : i32
    %c0_i32_0 = arith.constant 0 : i32
    %c0_i32_1 = arith.constant 0 : i32
    return %c0_i32, %c0_i32_0 : i32, i32
  }
  func.func @transform_7(%arg0: i32) -> (i32, i32) {
    %c0_i32 = arith.constant 0 : i32
    %c0_i32_0 = arith.constant 0 : i32
    return %arg0, %c0_i32 : i32, i32
  }
}

</mosaic_0001>

<llo_original>
// kernel: tpu_custom_call.1
$region0: #{tpu_custom_call.1}
  #allocation0 [shape = 'u32[]', space=smem, size = 0x4, offset = 0x4, fixed_abs, tag = 'smem constant byte address 0x4 - core index']
  #allocation1 [shape = 'u32[144,128]{1,0:T(1,128)}', space=vmem, size = 0x12000, scoped, tag = 'internal scratch']
  #allocation2 [shape = 'f32[1,1]{1,0:T(1,128)S(6)}', space=smem, size = 0x200, scoped, tag = 'scoped memory for tpu_custom_call.1']
  %s0 = inlined_call_operand.hbm [shape: f32[64,784], index: 0, kind: input, shape index: {}]
  %s1 = inlined_call_operand.hbm [shape: bf16[784,512], index: 1, kind: input, shape index: {}]
  %s2 = inlined_call_operand.vmem [shape: f32[1,512], index: 2, kind: input, shape index: {}]
  %s3 = inlined_call_operand.hbm [shape: bf16[512,256], index: 3, kind: input, shape index: {}]
  %s4 = inlined_call_operand.vmem [shape: f32[1,256], index: 4, kind: input, shape index: {}]
  %s5 = inlined_call_operand.vmem [shape: f32[1,256], index: 5, kind: input, shape index: {}]
  %s6 = inlined_call_operand.<no memory space> [shape: f32[1,1], index: 6, kind: input, shape index: {}]
  %s7 = inlined_call_operand.vmem [shape: f32[64,1], index: 7, kind: output, shape index: {}]
  %s8 = sld [smem:[#allocation0]]
  $region50: #{tpu_custom_call.1} parent=0
    _
  %s10 = ssub.s32 1, %s8
  %s11 = scalar_select 0, %s10, %s8
  %12 = sst [smem:[#allocation2]] %s6
  $region1: #{tpu_custom_call.1} parent=0
    #allocation3 [shape = 'u8[229376]{0}', space=vmem, size = 0x38000, scoped, tag = 'input window, operand 0, single buffered']
    #allocation4 [shape = 's32[1]{0}', space=sflag, size = 0x4, scoped, tag = 'scoped memory for tpu_custom_call.1']
    #allocation5 [shape = 'u8[802816]{0}', space=vmem, size = 0xc4000, scoped, tag = 'input window, operand 1, single buffered']
    #allocation6 [shape = 's32[1]{0}', space=sflag, size = 0x4, scoped, tag = 'scoped memory for tpu_custom_call.1']
    #allocation7 [shape = 'u8[262144]{0}', space=vmem, size = 0x40000, scoped, tag = 'input window, operand 3, single buffered']
    %13 = vsyncpa [#allocation4], 0
    %14 = vsyncpa [#allocation6], 0
    // Predicated region
    $region2: #{tpu_custom_call.1} parent=1 // pred_check
      _
    $region3: #{tpu_custom_call.1} parent=1 // pred_check_branch
      %16 = sbr.rel (0) target = $region5
    $region4: #{tpu_custom_call.1} parent=1 // pred_region
      %s18 = ssub.s32 7168, 7168
      %19 = vsyncadd [#allocation4], %s18
      %s20 = sshll.u32 [#allocation3], 4
      %s21 = int_to_ptr.vmem [resolvable:$true] %s20
      %26 = dma.hbm_to_vmem [thread:$0]  %s0, 7168, %s21, [#allocation4], 896, 896, 56
    $region5: #{tpu_custom_call.1} parent=1 // pred_fallthru
      _
    // Predicated region
    $region6: #{tpu_custom_call.1} parent=1 // pred_check
      _
    $region7: #{tpu_custom_call.1} parent=1 // pred_check_branch
      %28 = sbr.rel (0) target = $region9
    $region8: #{tpu_custom_call.1} parent=1 // pred_region
      %s30 = ssub.s32 25088, 25088
      %31 = vsyncadd [#allocation6], %s30
      %s32 = sshll.u32 [#allocation5], 4
      %s33 = int_to_ptr.vmem [resolvable:$true] %s32
      %38 = dma.hbm_to_vmem [thread:$0]  %s1, 25088, %s33, [#allocation6], 256, 256, 16
    $region9: #{tpu_custom_call.1} parent=1 // pred_fallthru
      _
    // Predicated region
    $region10: #{tpu_custom_call.1} parent=1 // pred_check
      _
    $region11: #{tpu_custom_call.1} parent=1 // pred_check_branch
      %40 = sbr.rel (0) target = $region13
    $region12: #{tpu_custom_call.1} parent=1 // pred_region
      _
    $region13: #{tpu_custom_call.1} parent=1 // pred_fallthru
      _
    // Predicated region
    $region14: #{tpu_custom_call.1} parent=1 // pred_check
      _
    $region15: #{tpu_custom_call.1} parent=1 // pred_check_branch
      %42 = sbr.rel (0) target = $region17
    $region16: #{tpu_custom_call.1} parent=1 // pred_region
      %s44 = ssub.s32 8192, 8192
      %45 = vsyncadd [#allocation6], %s44
      %s46 = sshll.u32 [#allocation7], 4
      %s47 = int_to_ptr.vmem [resolvable:$true] %s46
      %52 = dma.hbm_to_vmem [thread:$0]  %s3, 8192, %s47, [#allocation6], 128, 128, 8
    $region17: #{tpu_custom_call.1} parent=1 // pred_fallthru
      _
    // Predicated region
    $region18: #{tpu_custom_call.1} parent=1 // pred_check
      _
    $region19: #{tpu_custom_call.1} parent=1 // pred_check_branch
      %54 = sbr.rel (0) target = $region21
    $region20: #{tpu_custom_call.1} parent=1 // pred_region
      _
    $region21: #{tpu_custom_call.1} parent=1 // pred_fallthru
      _
    // Predicated region
    $region22: #{tpu_custom_call.1} parent=1 // pred_check
      _
    $region23: #{tpu_custom_call.1} parent=1 // pred_check_branch
      %56 = sbr.rel (0) target = $region25
    $region24: #{tpu_custom_call.1} parent=1 // pred_region
      _
    $region25: #{tpu_custom_call.1} parent=1 // pred_fallthru
      _
    // Predicated region
    $region26: #{tpu_custom_call.1} parent=1 // pred_check
      _
    $region27: #{tpu_custom_call.1} parent=1 // pred_check_branch
      %58 = sbr.rel (0) target = $region29
    $region28: #{tpu_custom_call.1} parent=1 // pred_region
      _
    $region29: #{tpu_custom_call.1} parent=1 // pred_fallthru
      _
    // Predicated region
    $region30: #{tpu_custom_call.1} parent=1 // pred_check
      _
    $region31: #{tpu_custom_call.1} parent=1 // pred_check_branch
      %60 = sbr.rel (0) target = $region33
    $region32: #{tpu_custom_call.1} parent=1 // pred_region
      %61 = dma.done [#allocation4], 7168
    $region33: #{tpu_custom_call.1} parent=1 // pred_fallthru
      _
    // Predicated region
    $region34: #{tpu_custom_call.1} parent=1 // pred_check
      _
    $region35: #{tpu_custom_call.1} parent=1 // pred_check_branch
      %63 = sbr.rel (0) target = $region37
    $region36: #{tpu_custom_call.1} parent=1 // pred_region
      %64 = dma.done [#allocation6], 25088
    $region37: #{tpu_custom_call.1} parent=1 // pred_fallthru
      _
    // Predicated region
    $region38: #{tpu_custom_call.1} parent=1 // pred_check
      _
    $region39: #{tpu_custom_call.1} parent=1 // pred_check_branch
      %66 = sbr.rel (0) target = $region41
    $region40: #{tpu_custom_call.1} parent=1 // pred_region
      %67 = dma.done [#allocation6], 8192
    $region41: #{tpu_custom_call.1} parent=1 // pred_fallthru
      _
    %v69 = vld [vmem:[#allocation3] sm:$0xff]
    %v70 = vld [vmem:[#allocation3 + $0x8] sm:$0xff]
    %v71 = vld [vmem:[#allocation3 + $0x10] sm:$0xff]
    %v72 = vld [vmem:[#allocation3 + $0x18] sm:$0xff]
    %v73 = vld [vmem:[#allocation3 + $0x20] sm:$0xff]
    %v74 = vld [vmem:[#allocation3 + $0x28] sm:$0xff]
    %v75 = vld [vmem:[#allocation3 + $0x30] sm:$0xff]
    %v76 = vld [vmem:[#allocation3 + $0x38] sm:$0xff]
    %v77 = vld [vmem:[#allocation3 + $0x40] sm:$0xff]
    %v78 = vld [vmem:[#allocation3 + $0x48] sm:$0xff]
    %v79 = vld [vmem:[#allocation3 + $0x50] sm:$0xff]
    %v80 = vld [vmem:[#allocation3 + $0x58] sm:$0xff]
    %v81 = vld [vmem:[#allocation3 + $0x60] sm:$0xff]
    %v82 = vld [vmem:[#allocation3 + $0x68] sm:$0xff]
    %v83 = vld [vmem:[#allocation3 + $0x70] sm:$0xff]
    %v84 = vld [vmem:[#allocation3 + $0x78] sm:$0xff]
    %v85 = vld [vmem:[#allocation3 + $0x80] sm:$0xff]
    %v86 = vld [vmem:[#allocation3 + $0x88] sm:$0xff]
    %v87 = vld [vmem:[#allocation3 + $0x90] sm:$0xff]
    %v88 = vld [vmem:[#allocation3 + $0x98] sm:$0xff]
    %v89 = vld [vmem:[#allocation3 + $0xa0] sm:$0xff]
    %v90 = vld [vmem:[#allocation3 + $0xa8] sm:$0xff]
    %v91 = vld [vmem:[#allocation3 + $0xb0] sm:$0xff]
    %v92 = vld [vmem:[#allocation3 + $0xb8] sm:$0xff]
    %v93 = vld [vmem:[#allocation3 + $0xc0] sm:$0xff]
    %v94 = vld [vmem:[#allocation3 + $0xc8] sm:$0xff]
    %v95 = vld [vmem:[#allocation3 + $0xd0] sm:$0xff]
    %v96 = vld [vmem:[#allocation3 + $0xd8] sm:$0xff]
    %v97 = vld [vmem:[#allocation3 + $0xe0] sm:$0xff]
    %v98 = vld [vmem:[#allocation3 + $0xe8] sm:$0xff]
    %v99 = vld [vmem:[#allocation3 + $0xf0] sm:$0xff]
    %v100 = vld [vmem:[#allocation3 + $0xf8] sm:$0xff]
    %v101 = vld [vmem:[#allocation3 + $0x100] sm:$0xff]
    %v102 = vld [vmem:[#allocation3 + $0x108] sm:$0xff]
    %v103 = vld [vmem:[#allocation3 + $0x110] sm:$0xff]
    %v104 = vld [vmem:[#allocation3 + $0x118] sm:$0xff]
    %v105 = vld [vmem:[#allocation3 + $0x120] sm:$0xff]
    %v106 = vld [vmem:[#allocation3 + $0x128] sm:$0xff]
    %v107 = vld [vmem:[#allocation3 + $0x130] sm:$0xff]
    %v108 = vld [vmem:[#allocation3 + $0x138] sm:$0xff]
    %v109 = vld [vmem:[#allocation3 + $0x140] sm:$0xff]
    %v110 = vld [vmem:[#allocation3 + $0x148] sm:$0xff]
    %v111 = vld [vmem:[#allocation3 + $0x150] sm:$0xff]
    %v112 = vld [vmem:[#allocation3 + $0x158] sm:$0xff]
    %v113 = vld [vmem:[#allocation3 + $0x160] sm:$0xff]
    %v114 = vld [vmem:[#allocation3 + $0x168] sm:$0xff]
    %v115 = vld [vmem:[#allocation3 + $0x170] sm:$0xff]
    %v116 = vld [vmem:[#allocation3 + $0x178] sm:$0xff]
    %v117 = vld [vmem:[#allocation3 + $0x180] sm:$0xff]
    %v118 = vld [vmem:[#allocation3 + $0x188] sm:$0xff]
    %v119 = vld [vmem:[#allocation3 + $0x190] sm:$0xff]
    %v120 = vld [vmem:[#allocation3 + $0x198] sm:$0xff]
    %v121 = vld [vmem:[#allocation3 + $0x1a0] sm:$0xff]
    %v122 = vld [vmem:[#allocation3 + $0x1a8] sm:$0xff]
    %v123 = vld [vmem:[#allocation3 + $0x1b0] sm:$0xff]
    %v124 = vld [vmem:[#allocation3 + $0x1b8] sm:$0xff]
    %v125 = vpack.c.bf16 %v76, %v69
    %v126 = vpack.c.bf16 %v77, %v70
    %v127 = vpack.c.bf16 %v78, %v71
    %v128 = vpack.c.bf16 %v79, %v72
    %v129 = vpack.c.bf16 %v80, %v73
    %v130 = vpack.c.bf16 %v81, %v74
    %v131 = vpack.c.bf16 %v82, %v75
    %v132 = vpack.c.bf16 %v90, %v83
    %v133 = vpack.c.bf16 %v91, %v84
    %v134 = vpack.c.bf16 %v92, %v85
    %v135 = vpack.c.bf16 %v93, %v86
    %v136 = vpack.c.bf16 %v94, %v87
    %v137 = vpack.c.bf16 %v95, %v88
    %v138 = vpack.c.bf16 %v96, %v89
    %v139 = vpack.c.bf16 %v104, %v97
    %v140 = vpack.c.bf16 %v105, %v98
    %v141 = vpack.c.bf16 %v106, %v99
    %v142 = vpack.c.bf16 %v107, %v100
    %v143 = vpack.c.bf16 %v108, %v101
    %v144 = vpack.c.bf16 %v109, %v102
    %v145 = vpack.c.bf16 %v110, %v103
    %v146 = vpack.c.bf16 %v118, %v111
    %v147 = vpack.c.bf16 %v119, %v112
    %v148 = vpack.c.bf16 %v120, %v113
    %v149 = vpack.c.bf16 %v121, %v114
    %v150 = vpack.c.bf16 %v122, %v115
    %v151 = vpack.c.bf16 %v123, %v116
    %v152 = vpack.c.bf16 %v124, %v117
    %v153 = vld [vmem:[#allocation5] sm:$0xff]
    %v154 = vld [vmem:[#allocation5 + $0x8] sm:$0xff]
    %v155 = vld [vmem:[#allocation5 + $0x10] sm:$0xff]
    %v156 = vld [vmem:[#allocation5 + $0x18] sm:$0xff]
    %v157 = vld [vmem:[#allocation5 + $0x20] sm:$0xff]
    %v158 = vld [vmem:[#allocation5 + $0x28] sm:$0xff]
    %v159 = vld [vmem:[#allocation5 + $0x30] sm:$0xff]
    %v160 = vld [vmem:[#allocation5 + $0x38] sm:$0xff]
    %v161 = vld [vmem:[#allocation5 + $0x40] sm:$0xff]
    %v162 = vld [vmem:[#allocation5 + $0x48] sm:$0xff]
    %v163 = vld [vmem:[#allocation5 + $0x50] sm:$0xff]
    %v164 = vld [vmem:[#allocation5 + $0x58] sm:$0xff]
    %v165 = vld [vmem:[#allocation5 + $0x60] sm:$0xff]
    %v166 = vld [vmem:[#allocation5 + $0x68] sm:$0xff]
    %v167 = vld [vmem:[#allocation5 + $0x70] sm:$0xff]
    %v168 = vld [vmem:[#allocation5 + $0x78] sm:$0xff]
    %v169 = vld [vmem:[#allocation5 + $0x80] sm:$0xff]
    %v170 = vld [vmem:[#allocation5 + $0x88] sm:$0xff]
    %v171 = vld [vmem:[#allocation5 + $0x90] sm:$0xff]
    %v172 = vld [vmem:[#allocation5 + $0x98] sm:$0xff]
    %v173 = vld [vmem:[#allocation5 + $0xa0] sm:$0xff]
    %v174 = vld [vmem:[#allocation5 + $0xa8] sm:$0xff]
    %v175 = vld [vmem:[#allocation5 + $0xb0] sm:$0xff]
    %v176 = vld [vmem:[#allocation5 + $0xb8] sm:$0xff]
    %v177 = vld [vmem:[#allocation5 + $0xc0] sm:$0xff]
    %v178 = vld [vmem:[#allocation5 + $0xc8] sm:$0xff]
    %v179 = vld [vmem:[#allocation5 + $0xd0] sm:$0xff]
    %v180 = vld [vmem:[#allocation5 + $0xd8] sm:$0xff]
    %v181 = vld [vmem:[#allocation5 + $0xe0] sm:$0xff]
    %v182 = vld [vmem:[#allocation5 + $0xe8] sm:$0xff]
    %v183 = vld [vmem:[#allocation5 + $0xf0] sm:$0xff]
    %v184 = vld [vmem:[#allocation5 + $0xf8] sm:$0xff]
    %v185 = vld [vmem:[#allocation5 + $0x100] sm:$0xff]
    %v186 = vld [vmem:[#allocation5 + $0x108] sm:$0xff]
    %v187 = vld [vmem:[#allocation5 + $0x110] sm:$0xff]
    %v188 = vld [vmem:[#allocation5 + $0x118] sm:$0xff]
    %v189 = vld [vmem:[#allocation5 + $0x120] sm:$0xff]
    %v190 = vld [vmem:[#allocation5 + $0x128] sm:$0xff]
    %v191 = vld [vmem:[#allocation5 + $0x130] sm:$0xff]
    %v192 = vld [vmem:[#allocation5 + $0x138] sm:$0xff]
    %v193 = vld [vmem:[#allocation5 + $0x140] sm:$0xff]
    %v194 = vld [vmem:[#allocation5 + $0x148] sm:$0xff]
    %v195 = vld [vmem:[#allocation5 + $0x150] sm:$0xff]
    %v196 = vld [vmem:[#allocation5 + $0x158] sm:$0xff]
    %v197 = vld [vmem:[#allocation5 + $0x160] sm:$0xff]
    %v198 = vld [vmem:[#allocation5 + $0x168] sm:$0xff]
    %v199 = vld [vmem:[#allocation5 + $0x170] sm:$0xff]
    %v200 = vld [vmem:[#allocation5 + $0x178] sm:$0xff]
    %v201 = vld [vmem:[#allocation5 + $0x180] sm:$0xff]
    %v202 = vld [vmem:[#allocation5 + $0x188] sm:$0xff]
    %v203 = vld [vmem:[#allocation5 + $0x190] sm:$0xff]
    %v204 = vld [vmem:[#allocation5 + $0x198] sm:$0xff]
    %v205 = vld [vmem:[#allocation5 + $0x1a0] sm:$0xff]
    %v206 = vld [vmem:[#allocation5 + $0x1a8] sm:$0xff]
    %v207 = vld [vmem:[#allocation5 + $0x1b0] sm:$0xff]
    %v208 = vld [vmem:[#allocation5 + $0x1b8] sm:$0xff]
    %v209 = vld [vmem:[#allocation5 + $0x1c0] sm:$0xff]
    %v210 = vld [vmem:[#allocation5 + $0x1c8] sm:$0xff]
    %v211 = vld [vmem:[#allocation5 + $0x1d0] sm:$0xff]
    %v212 = vld [vmem:[#allocation5 + $0x1d8] sm:$0xff]
    %v213 = vld [vmem:[#allocation5 + $0x1e0] sm:$0xff]
    %v214 = vld [vmem:[#allocation5 + $0x1e8] sm:$0xff]
    %v215 = vld [vmem:[#allocation5 + $0x1f0] sm:$0xff]
    %v216 = vld [vmem:[#allocation5 + $0x1f8] sm:$0xff]
    %v217 = vld [vmem:[#allocation5 + $0x200] sm:$0xff]
    %v218 = vld [vmem:[#allocation5 + $0x208] sm:$0xff]
    %v219 = vld [vmem:[#allocation5 + $0x210] sm:$0xff]
    %v220 = vld [vmem:[#allocation5 + $0x218] sm:$0xff]
    %v221 = vld [vmem:[#allocation5 + $0x220] sm:$0xff]
    %v222 = vld [vmem:[#allocation5 + $0x228] sm:$0xff]
    %v223 = vld [vmem:[#allocation5 + $0x230] sm:$0xff]
    %v224 = vld [vmem:[#allocation5 + $0x238] sm:$0xff]
    %v225 = vld [vmem:[#allocation5 + $0x240] sm:$0xff]
    %v226 = vld [vmem:[#allocation5 + $0x248] sm:$0xff]
    %v227 = vld [vmem:[#allocation5 + $0x250] sm:$0xff]
    %v228 = vld [vmem:[#allocation5 + $0x258] sm:$0xff]
    %v229 = vld [vmem:[#allocation5 + $0x260] sm:$0xff]
    %v230 = vld [vmem:[#allocation5 + $0x268] sm:$0xff]
    %v231 = vld [vmem:[#allocation5 + $0x270] sm:$0xff]
    %v232 = vld [vmem:[#allocation5 + $0x278] sm:$0xff]
    %v233 = vld [vmem:[#allocation5 + $0x280] sm:$0xff]
    %v234 = vld [vmem:[#allocation5 + $0x288] sm:$0xff]
    %v235 = vld [vmem:[#allocation5 + $0x290] sm:$0xff]
    %v236 = vld [vmem:[#allocation5 + $0x298] sm:$0xff]
    %v237 = vld [vmem:[#allocation5 + $0x2a0] sm:$0xff]
    %v238 = vld [vmem:[#allocation5 + $0x2a8] sm:$0xff]
    %v239 = vld [vmem:[#allocation5 + $0x2b0] sm:$0xff]
    %v240 = vld [vmem:[#allocation5 + $0x2b8] sm:$0xff]
    %v241 = vld [vmem:[#allocation5 + $0x2c0] sm:$0xff]
    %v242 = vld [vmem:[#allocation5 + $0x2c8] sm:$0xff]
    %v243 = vld [vmem:[#allocation5 + $0x2d0] sm:$0xff]
    %v244 = vld [vmem:[#allocation5 + $0x2d8] sm:$0xff]
    %v245 = vld [vmem:[#allocation5 + $0x2e0] sm:$0xff]
    %v246 = vld [vmem:[#allocation5 + $0x2e8] sm:$0xff]
    %v247 = vld [vmem:[#allocation5 + $0x2f0] sm:$0xff]
    %v248 = vld [vmem:[#allocation5 + $0x2f8] sm:$0xff]
    %v249 = vld [vmem:[#allocation5 + $0x300] sm:$0xff]
    %v250 = vld [vmem:[#allocation5 + $0x308] sm:$0xff]
    %v251 = vld [vmem:[#allocation5 + $0x310] sm:$0xff]
    %v252 = vld [vmem:[#allocation5 + $0x318] sm:$0xff]
    %v253 = vld [vmem:[#allocation5 + $0x320] sm:$0xff]
    %v254 = vld [vmem:[#allocation5 + $0x328] sm:$0xff]
    %v255 = vld [vmem:[#allocation5 + $0x330] sm:$0xff]
    %v256 = vld [vmem:[#allocation5 + $0x338] sm:$0xff]
    %v257 = vld [vmem:[#allocation5 + $0x340] sm:$0xff]
    %v258 = vld [vmem:[#allocation5 + $0x348] sm:$0xff]
    %v259 = vld [vmem:[#allocation5 + $0x350] sm:$0xff]
    %v260 = vld [vmem:[#allocation5 + $0x358] sm:$0xff]
    %v261 = vld [vmem:[#allocation5 + $0x360] sm:$0xff]
    %v262 = vld [vmem:[#allocation5 + $0x368] sm:$0xff]
    %v263 = vld [vmem:[#allocation5 + $0x370] sm:$0xff]
    %v264 = vld [vmem:[#allocation5 + $0x378] sm:$0xff]
    %v265 = vld [vmem:[#allocation5 + $0x380] sm:$0xff]
    %v266 = vld [vmem:[#allocation5 + $0x388] sm:$0xff]
    %v267 = vld [vmem:[#allocation5 + $0x390] sm:$0xff]
    %v268 = vld [vmem:[#allocation5 + $0x398] sm:$0xff]
    %v269 = vld [vmem:[#allocation5 + $0x3a0] sm:$0xff]
    %v270 = vld [vmem:[#allocation5 + $0x3a8] sm:$0xff]
    %v271 = vld [vmem:[#allocation5 + $0x3b0] sm:$0xff]
    %v272 = vld [vmem:[#allocation5 + $0x3b8] sm:$0xff]
    %v273 = vld [vmem:[#allocation5 + $0x3c0] sm:$0xff]
    %v274 = vld [vmem:[#allocation5 + $0x3c8] sm:$0xff]
    %v275 = vld [vmem:[#allocation5 + $0x3d0] sm:$0xff]
    %v276 = vld [vmem:[#allocation5 + $0x3d8] sm:$0xff]
    %v277 = vld [vmem:[#allocation5 + $0x3e0] sm:$0xff]
    %v278 = vld [vmem:[#allocation5 + $0x3e8] sm:$0xff]
    %v279 = vld [vmem:[#allocation5 + $0x3f0] sm:$0xff]
    %v280 = vld [vmem:[#allocation5 + $0x3f8] sm:$0xff]
    %v281 = vld [vmem:[#allocation5 + $0x400] sm:$0xff]
    %v282 = vld [vmem:[#allocation5 + $0x408] sm:$0xff]
    %v283 = vld [vmem:[#allocation5 + $0x410] sm:$0xff]
    %v284 = vld [vmem:[#allocation5 + $0x418] sm:$0xff]
    %v285 = vld [vmem:[#allocation5 + $0x420] sm:$0xff]
    %v286 = vld [vmem:[#allocation5 + $0x428] sm:$0xff]
    %v287 = vld [vmem:[#allocation5 + $0x430] sm:$0xff]
    %v288 = vld [vmem:[#allocation5 + $0x438] sm:$0xff]
    %v289 = vld [vmem:[#allocation5 + $0x440] sm:$0xff]
    %v290 = vld [vmem:[#allocation5 + $0x448] sm:$0xff]
    %v291 = vld [vmem:[#allocation5 + $0x450] sm:$0xff]
    %v292 = vld [vmem:[#allocation5 + $0x458] sm:$0xff]
    %v293 = vld [vmem:[#allocation5 + $0x460] sm:$0xff]
    %v294 = vld [vmem:[#allocation5 + $0x468] sm:$0xff]
    %v295 = vld [vmem:[#allocation5 + $0x470] sm:$0xff]
    %v296 = vld [vmem:[#allocation5 + $0x478] sm:$0xff]
    %v297 = vld [vmem:[#allocation5 + $0x480] sm:$0xff]
    %v298 = vld [vmem:[#allocation5 + $0x488] sm:$0xff]
    %v299 = vld [vmem:[#allocation5 + $0x490] sm:$0xff]
    %v300 = vld [vmem:[#allocation5 + $0x498] sm:$0xff]
    %v301 = vld [vmem:[#allocation5 + $0x4a0] sm:$0xff]
    %v302 = vld [vmem:[#allocation5 + $0x4a8] sm:$0xff]
    %v303 = vld [vmem:[#allocation5 + $0x4b0] sm:$0xff]
    %v304 = vld [vmem:[#allocation5 + $0x4b8] sm:$0xff]
    %v305 = vld [vmem:[#allocation5 + $0x4c0] sm:$0xff]
    %v306 = vld [vmem:[#allocation5 + $0x4c8] sm:$0xff]
    %v307 = vld [vmem:[#allocation5 + $0x4d0] sm:$0xff]
    %v308 = vld [vmem:[#allocation5 + $0x4d8] sm:$0xff]
    %v309 = vld [vmem:[#allocation5 + $0x4e0] sm:$0xff]
    %v310 = vld [vmem:[#allocation5 + $0x4e8] sm:$0xff]
    %v311 = vld [vmem:[#allocation5 + $0x4f0] sm:$0xff]
    %v312 = vld [vmem:[#allocation5 + $0x4f8] sm:$0xff]
    %v313 = vld [vmem:[#allocation5 + $0x500] sm:$0xff]
    %v314 = vld [vmem:[#allocation5 + $0x508] sm:$0xff]
    %v315 = vld [vmem:[#allocation5 + $0x510] sm:$0xff]
    %v316 = vld [vmem:[#allocation5 + $0x518] sm:$0xff]
    %v317 = vld [vmem:[#allocation5 + $0x520] sm:$0xff]
    %v318 = vld [vmem:[#allocation5 + $0x528] sm:$0xff]
    %v319 = vld [vmem:[#allocation5 + $0x530] sm:$0xff]
    %v320 = vld [vmem:[#allocation5 + $0x538] sm:$0xff]
    %v321 = vld [vmem:[#allocation5 + $0x540] sm:$0xff]
    %v322 = vld [vmem:[#allocation5 + $0x548] sm:$0xff]
    %v323 = vld [vmem:[#allocation5 + $0x550] sm:$0xff]
    %v324 = vld [vmem:[#allocation5 + $0x558] sm:$0xff]
    %v325 = vld [vmem:[#allocation5 + $0x560] sm:$0xff]
    %v326 = vld [vmem:[#allocation5 + $0x568] sm:$0xff]
    %v327 = vld [vmem:[#allocation5 + $0x570] sm:$0xff]
    %v328 = vld [vmem:[#allocation5 + $0x578] sm:$0xff]
    %v329 = vld [vmem:[#allocation5 + $0x580] sm:$0xff]
    %v330 = vld [vmem:[#allocation5 + $0x588] sm:$0xff]
    %v331 = vld [vmem:[#allocation5 + $0x590] sm:$0xff]
    %v332 = vld [vmem:[#allocation5 + $0x598] sm:$0xff]
    %v333 = vld [vmem:[#allocation5 + $0x5a0] sm:$0xff]
    %v334 = vld [vmem:[#allocation5 + $0x5a8] sm:$0xff]
    %v335 = vld [vmem:[#allocation5 + $0x5b0] sm:$0xff]
    %v336 = vld [vmem:[#allocation5 + $0x5b8] sm:$0xff]
    %v337 = vld [vmem:[#allocation5 + $0x5c0] sm:$0xff]
    %v338 = vld [vmem:[#allocation5 + $0x5c8] sm:$0xff]
    %v339 = vld [vmem:[#allocation5 + $0x5d0] sm:$0xff]
    %v340 = vld [vmem:[#allocation5 + $0x5d8] sm:$0xff]
    %v341 = vld [vmem:[#allocation5 + $0x5e0] sm:$0xff]
    %v342 = vld [vmem:[#allocation5 + $0x5e8] sm:$0xff]
    %v343 = vld [vmem:[#allocation5 + $0x5f0] sm:$0xff]
    %v344 = vld [vmem:[#allocation5 + $0x5f8] sm:$0xff]
    %v345 = vld [vmem:[#allocation5 + $0x600] sm:$0xff]
    %v346 = vld [vmem:[#allocation5 + $0x608] sm:$0xff]
    %v347 = vld [vmem:[#allocation5 + $0x610] sm:$0xff]
    %v348 = vld [vmem:[#allocation5 + $0x618] sm:$0xff]
    %v349 = vld [vmem:[%s2] sm:$0xf]
    %v351 = vlaneseq
    %v352 = vshrl.u32 %v351, 7
    %v353 = vsub.s32 0, %v352
    %v354 = vrot.slane %v349, %v353
    %v355 = vlaneseq
    %v356 = vshrl.u32 %v355, 7
    %v357 = vsub.s32 1, %v356
    %v358 = vrot.slane %v349, %v357
    %v359 = vlaneseq
    %v360 = vshrl.u32 %v359, 7
    %v361 = vsub.s32 2, %v360
    %v362 = vrot.slane %v349, %v361
    %v363 = vlaneseq
    %v364 = vshrl.u32 %v363, 7
    %v365 = vsub.s32 3, %v364
    %v366 = vrot.slane %v349, %v365
    %v567 = vunpack.c.l.b16 %v153
    %v568 = vunpack.c.h.b16 %v153
    %v569 = vunpack.c.l.b16 %v154
    %v570 = vunpack.c.h.b16 %v154
    %v571 = vunpack.c.l.b16 %v155
    %v572 = vunpack.c.h.b16 %v155
    %v573 = vunpack.c.l.b16 %v156
    %v574 = vunpack.c.h.b16 %v156
    %v575 = vunpack.c.l.b16 %v157
    %v576 = vunpack.c.h.b16 %v157
    %v577 = vunpack.c.l.b16 %v158
    %v578 = vunpack.c.h.b16 %v158
    %v579 = vunpack.c.l.b16 %v159
    %v580 = vunpack.c.h.b16 %v159
    %v581 = vunpack.c.l.b16 %v160
    %v582 = vunpack.c.h.b16 %v160
    %v583 = vunpack.c.l.b16 %v161
    %v584 = vunpack.c.h.b16 %v161
    %v585 = vunpack.c.l.b16 %v162
    %v586 = vunpack.c.h.b16 %v162
    %v587 = vunpack.c.l.b16 %v163
    %v588 = vunpack.c.h.b16 %v163
    %v589 = vunpack.c.l.b16 %v164
    %v590 = vunpack.c.h.b16 %v164
    %v591 = vunpack.c.l.b16 %v165
    %v592 = vunpack.c.h.b16 %v165
    %v593 = vunpack.c.l.b16 %v166
    %v594 = vunpack.c.h.b16 %v166
    %v595 = vunpack.c.l.b16 %v167
    %v596 = vunpack.c.h.b16 %v167
    %v597 = vunpack.c.l.b16 %v168
    %v598 = vunpack.c.h.b16 %v168
    %v599 = vunpack.c.l.b16 %v169
    %v600 = vunpack.c.h.b16 %v169
    %v601 = vunpack.c.l.b16 %v170
    %v602 = vunpack.c.h.b16 %v170
    %v603 = vunpack.c.l.b16 %v171
    %v604 = vunpack.c.h.b16 %v171
    %v605 = vunpack.c.l.b16 %v172
    %v606 = vunpack.c.h.b16 %v172
    %v607 = vunpack.c.l.b16 %v173
    %v608 = vunpack.c.h.b16 %v173
    %v609 = vunpack.c.l.b16 %v174
    %v610 = vunpack.c.h.b16 %v174
    %v611 = vunpack.c.l.b16 %v175
    %v612 = vunpack.c.h.b16 %v175
    %v613 = vunpack.c.l.b16 %v176
    %v614 = vunpack.c.h.b16 %v176
    %v615 = vunpack.c.l.b16 %v177
    %v616 = vunpack.c.h.b16 %v177
    %v617 = vunpack.c.l.b16 %v178
    %v618 = vunpack.c.h.b16 %v178
    %v619 = vunpack.c.l.b16 %v179
    %v620 = vunpack.c.h.b16 %v179
    %v621 = vunpack.c.l.b16 %v180
    %v622 = vunpack.c.h.b16 %v180
    %v623 = vunpack.c.l.b16 %v181
    %v624 = vunpack.c.h.b16 %v181
    %v625 = vunpack.c.l.b16 %v182
    %v626 = vunpack.c.h.b16 %v182
    %v627 = vunpack.c.l.b16 %v183
    %v628 = vunpack.c.h.b16 %v183
    %v629 = vunpack.c.l.b16 %v184
    %v630 = vunpack.c.h.b16 %v184
    %v631 = vunpack.c.l.b16 %v185
    %v632 = vunpack.c.h.b16 %v185
    %v633 = vunpack.c.l.b16 %v186
    %v634 = vunpack.c.h.b16 %v186
    %v635 = vunpack.c.l.b16 %v187
    %v636 = vunpack.c.h.b16 %v187
    %v637 = vunpack.c.l.b16 %v188
    %v638 = vunpack.c.h.b16 %v188
    %v639 = vunpack.c.l.b16 %v189
    %v640 = vunpack.c.h.b16 %v189
    %v641 = vunpack.c.l.b16 %v190
    %v642 = vunpack.c.h.b16 %v190
    %v643 = vunpack.c.l.b16 %v191
    %v644 = vunpack.c.h.b16 %v191
    %v645 = vunpack.c.l.b16 %v192
    %v646 = vunpack.c.h.b16 %v192
    %v647 = vunpack.c.l.b16 %v193
    %v648 = vunpack.c.h.b16 %v193
    %v649 = vunpack.c.l.b16 %v194
    %v650 = vunpack.c.h.b16 %v194
    %v651 = vunpack.c.l.b16 %v195
    %v652 = vunpack.c.h.b16 %v195
    %v653 = vunpack.c.l.b16 %v196
    %v654 = vunpack.c.h.b16 %v196
    %v655 = vunpack.c.l.b16 %v197
    %v656 = vunpack.c.h.b16 %v197
    %v657 = vunpack.c.l.b16 %v198
    %v658 = vunpack.c.h.b16 %v198
    %v659 = vunpack.c.l.b16 %v199
    %v660 = vunpack.c.h.b16 %v199
    %v661 = vunpack.c.l.b16 %v200
    %v662 = vunpack.c.h.b16 %v200
    %v663 = vunpack.c.l.b16 %v201
    %v664 = vunpack.c.h.b16 %v201
    %v665 = vunpack.c.l.b16 %v202
    %v666 = vunpack.c.h.b16 %v202
    %v667 = vunpack.c.l.b16 %v203
    %v668 = vunpack.c.h.b16 %v203
    %v669 = vunpack.c.l.b16 %v204
    %v670 = vunpack.c.h.b16 %v204
    %v671 = vunpack.c.l.b16 %v205
    %v672 = vunpack.c.h.b16 %v205
    %v673 = vunpack.c.l.b16 %v206
    %v674 = vunpack.c.h.b16 %v206
    %v675 = vunpack.c.l.b16 %v207
    %v676 = vunpack.c.h.b16 %v207
    %v677 = vunpack.c.l.b16 %v208
    %v678 = vunpack.c.h.b16 %v208
    %v679 = vunpack.c.l.b16 %v209
    %v680 = vunpack.c.h.b16 %v209
    %v681 = vunpack.c.l.b16 %v210
    %v682 = vunpack.c.h.b16 %v210
    %v683 = vunpack.c.l.b16 %v211
    %v684 = vunpack.c.h.b16 %v211
    %v685 = vunpack.c.l.b16 %v212
    %v686 = vunpack.c.h.b16 %v212
    %v687 = vunpack.c.l.b16 %v213
    %v688 = vunpack.c.h.b16 %v213
    %v689 = vunpack.c.l.b16 %v214
    %v690 = vunpack.c.h.b16 %v214
    %v691 = vunpack.c.l.b16 %v215
    %v692 = vunpack.c.h.b16 %v215
    %v693 = vunpack.c.l.b16 %v216
    %v694 = vunpack.c.h.b16 %v216
    %v695 = vunpack.c.l.b16 %v217
    %v696 = vunpack.c.h.b16 %v217
    %v697 = vunpack.c.l.b16 %v218
    %v698 = vunpack.c.h.b16 %v218
    %v699 = vunpack.c.l.b16 %v219
    %v700 = vunpack.c.h.b16 %v219
    %v701 = vunpack.c.l.b16 %v220
    %v702 = vunpack.c.h.b16 %v220
    %v703 = vunpack.c.l.b16 %v221
    %v704 = vunpack.c.h.b16 %v221
    %v705 = vunpack.c.l.b16 %v222
    %v706 = vunpack.c.h.b16 %v222
    %v707 = vunpack.c.l.b16 %v223
    %v708 = vunpack.c.h.b16 %v223
    %v709 = vunpack.c.l.b16 %v224
    %v710 = vunpack.c.h.b16 %v224
    %v711 = vunpack.c.l.b16 %v225
    %v712 = vunpack.c.h.b16 %v225
    %v713 = vunpack.c.l.b16 %v226
    %v714 = vunpack.c.h.b16 %v226
    %v715 = vunpack.c.l.b16 %v227
    %v716 = vunpack.c.h.b16 %v227
    %v717 = vunpack.c.l.b16 %v228
    %v718 = vunpack.c.h.b16 %v228
    %v719 = vunpack.c.l.b16 %v229
    %v720 = vunpack.c.h.b16 %v229
    %v721 = vunpack.c.l.b16 %v230
    %v722 = vunpack.c.h.b16 %v230
    %v723 = vunpack.c.l.b16 %v231
    %v724 = vunpack.c.h.b16 %v231
    %v725 = vunpack.c.l.b16 %v232
    %v726 = vunpack.c.h.b16 %v232
    %v727 = vunpack.c.l.b16 %v233
    %v728 = vunpack.c.h.b16 %v233
    %v729 = vunpack.c.l.b16 %v234
    %v730 = vunpack.c.h.b16 %v234
    %v731 = vunpack.c.l.b16 %v235
    %v732 = vunpack.c.h.b16 %v235
    %v733 = vunpack.c.l.b16 %v236
    %v734 = vunpack.c.h.b16 %v236
    %v735 = vunpack.c.l.b16 %v237
    %v736 = vunpack.c.h.b16 %v237
    %v737 = vunpack.c.l.b16 %v238
    %v738 = vunpack.c.h.b16 %v238
    %v739 = vunpack.c.l.b16 %v239
    %v740 = vunpack.c.h.b16 %v239
    %v741 = vunpack.c.l.b16 %v240
    %v742 = vunpack.c.h.b16 %v240
    %v743 = vunpack.c.l.b16 %v241
    %v744 = vunpack.c.h.b16 %v241
    %v745 = vunpack.c.l.b16 %v242
    %v746 = vunpack.c.h.b16 %v242
    %v747 = vunpack.c.l.b16 %v243
    %v748 = vunpack.c.h.b16 %v243
    %v749 = vunpack.c.l.b16 %v244
    %v750 = vunpack.c.h.b16 %v244
    %v751 = vunpack.c.l.b16 %v245
    %v752 = vunpack.c.h.b16 %v245
    %v753 = vunpack.c.l.b16 %v246
    %v754 = vunpack.c.h.b16 %v246
    %v755 = vunpack.c.l.b16 %v247
    %v756 = vunpack.c.h.b16 %v247
    %v757 = vunpack.c.l.b16 %v248
    %v758 = vunpack.c.h.b16 %v248
    %v759 = vunpack.c.l.b16 %v249
    %v760 = vunpack.c.h.b16 %v249
    %v761 = vunpack.c.l.b16 %v250
    %v762 = vunpack.c.h.b16 %v250
    %v763 = vunpack.c.l.b16 %v251
    %v764 = vunpack.c.h.b16 %v251
    %v765 = vunpack.c.l.b16 %v252
    %v766 = vunpack.c.h.b16 %v252
    %v767 = vunpack.c.l.b16 %v253
    %v768 = vunpack.c.h.b16 %v253
    %v769 = vunpack.c.l.b16 %v254
    %v770 = vunpack.c.h.b16 %v254
    %v771 = vunpack.c.l.b16 %v255
    %v772 = vunpack.c.h.b16 %v255
    %v773 = vunpack.c.l.b16 %v256
    %v774 = vunpack.c.h.b16 %v256
    %v775 = vunpack.c.l.b16 %v257
    %v776 = vunpack.c.h.b16 %v257
    %v777 = vunpack.c.l.b16 %v258
    %v778 = vunpack.c.h.b16 %v258
    %v779 = vunpack.c.l.b16 %v259
    %v780 = vunpack.c.h.b16 %v259
    %v781 = vunpack.c.l.b16 %v260
    %v782 = vunpack.c.h.b16 %v260
    %v783 = vunpack.c.l.b16 %v261
    %v784 = vunpack.c.h.b16 %v261
    %v785 = vunpack.c.l.b16 %v262
    %v786 = vunpack.c.h.b16 %v262
    %v787 = vunpack.c.l.b16 %v263
    %v788 = vunpack.c.h.b16 %v263
    %v789 = vunpack.c.l.b16 %v264
    %v790 = vunpack.c.h.b16 %v264
    %v791 = vunpack.c.l.b16 %v265
    %v792 = vunpack.c.h.b16 %v265
    %v793 = vunpack.c.l.b16 %v266
    %v794 = vunpack.c.h.b16 %v266
    %v795 = vunpack.c.l.b16 %v267
    %v796 = vunpack.c.h.b16 %v267
    %v797 = vunpack.c.l.b16 %v268
    %v798 = vunpack.c.h.b16 %v268
    %v799 = vunpack.c.l.b16 %v269
    %v800 = vunpack.c.h.b16 %v269
    %v801 = vunpack.c.l.b16 %v270
    %v802 = vunpack.c.h.b16 %v270
    %v803 = vunpack.c.l.b16 %v271
    %v804 = vunpack.c.h.b16 %v271
    %v805 = vunpack.c.l.b16 %v272
    %v806 = vunpack.c.h.b16 %v272
    %v807 = vunpack.c.l.b16 %v273
    %v808 = vunpack.c.h.b16 %v273
    %v809 = vunpack.c.l.b16 %v274
    %v810 = vunpack.c.h.b16 %v274
    %v811 = vunpack.c.l.b16 %v275
    %v812 = vunpack.c.h.b16 %v275
    %v813 = vunpack.c.l.b16 %v276
    %v814 = vunpack.c.h.b16 %v276
    %v815 = vunpack.c.l.b16 %v277
    %v816 = vunpack.c.h.b16 %v277
    %v817 = vunpack.c.l.b16 %v278
    %v818 = vunpack.c.h.b16 %v278
    %v819 = vunpack.c.l.b16 %v279
    %v820 = vunpack.c.h.b16 %v279
    %v821 = vunpack.c.l.b16 %v280
    %v822 = vunpack.c.h.b16 %v280
    %v823 = vunpack.c.l.b16 %v281
    %v824 = vunpack.c.h.b16 %v281
    %v825 = vunpack.c.l.b16 %v282
    %v826 = vunpack.c.h.b16 %v282
    %v827 = vunpack.c.l.b16 %v283
    %v828 = vunpack.c.h.b16 %v283
    %v829 = vunpack.c.l.b16 %v284
    %v830 = vunpack.c.h.b16 %v284
    %v831 = vunpack.c.l.b16 %v285
    %v832 = vunpack.c.h.b16 %v285
    %v833 = vunpack.c.l.b16 %v286
    %v834 = vunpack.c.h.b16 %v286
    %v835 = vunpack.c.l.b16 %v287
    %v836 = vunpack.c.h.b16 %v287
    %v837 = vunpack.c.l.b16 %v288
    %v838 = vunpack.c.h.b16 %v288
    %v839 = vunpack.c.l.b16 %v289
    %v840 = vunpack.c.h.b16 %v289
    %v841 = vunpack.c.l.b16 %v290
    %v842 = vunpack.c.h.b16 %v290
    %v843 = vunpack.c.l.b16 %v291
    %v844 = vunpack.c.h.b16 %v291
    %v845 = vunpack.c.l.b16 %v292
    %v846 = vunpack.c.h.b16 %v292
    %v847 = vunpack.c.l.b16 %v293
    %v848 = vunpack.c.h.b16 %v293
    %v849 = vunpack.c.l.b16 %v294
    %v850 = vunpack.c.h.b16 %v294
    %v851 = vunpack.c.l.b16 %v295
    %v852 = vunpack.c.h.b16 %v295
    %v853 = vunpack.c.l.b16 %v296
    %v854 = vunpack.c.h.b16 %v296
    %v855 = vunpack.c.l.b16 %v297
    %v856 = vunpack.c.h.b16 %v297
    %v857 = vunpack.c.l.b16 %v298
    %v858 = vunpack.c.h.b16 %v298
    %v859 = vunpack.c.l.b16 %v299
    %v860 = vunpack.c.h.b16 %v299
    %v861 = vunpack.c.l.b16 %v300
    %v862 = vunpack.c.h.b16 %v300
    %v863 = vunpack.c.l.b16 %v301
    %v864 = vunpack.c.h.b16 %v301
    %v865 = vunpack.c.l.b16 %v302
    %v866 = vunpack.c.h.b16 %v302
    %v867 = vunpack.c.l.b16 %v303
    %v868 = vunpack.c.h.b16 %v303
    %v869 = vunpack.c.l.b16 %v304
    %v870 = vunpack.c.h.b16 %v304
    %v871 = vunpack.c.l.b16 %v305
    %v872 = vunpack.c.h.b16 %v305
    %v873 = vunpack.c.l.b16 %v306
    %v874 = vunpack.c.h.b16 %v306
    %v875 = vunpack.c.l.b16 %v307
    %v876 = vunpack.c.h.b16 %v307
    %v877 = vunpack.c.l.b16 %v308
    %v878 = vunpack.c.h.b16 %v308
    %v879 = vunpack.c.l.b16 %v309
    %v880 = vunpack.c.h.b16 %v309
    %v881 = vunpack.c.l.b16 %v310
    %v882 = vunpack.c.h.b16 %v310
    %v883 = vunpack.c.l.b16 %v311
    %v884 = vunpack.c.h.b16 %v311
    %v885 = vunpack.c.l.b16 %v312
    %v886 = vunpack.c.h.b16 %v312
    %v887 = vunpack.c.l.b16 %v313
    %v888 = vunpack.c.h.b16 %v313
    %v889 = vunpack.c.l.b16 %v314
    %v890 = vunpack.c.h.b16 %v314
    %v891 = vunpack.c.l.b16 %v315
    %v892 = vunpack.c.h.b16 %v315
    %v893 = vunpack.c.l.b16 %v316
    %v894 = vunpack.c.h.b16 %v316
    %v895 = vunpack.c.l.b16 %v317
    %v896 = vunpack.c.h.b16 %v317
    %v897 = vunpack.c.l.b16 %v318
    %v898 = vunpack.c.h.b16 %v318
    %v899 = vunpack.c.l.b16 %v319
    %v900 = vunpack.c.h.b16 %v319
    %v901 = vunpack.c.l.b16 %v320
    %v902 = vunpack.c.h.b16 %v320
    %v903 = vunpack.c.l.b16 %v321
    %v904 = vunpack.c.h.b16 %v321
    %v905 = vunpack.c.l.b16 %v322
    %v906 = vunpack.c.h.b16 %v322
    %v907 = vunpack.c.l.b16 %v323
    %v908 = vunpack.c.h.b16 %v323
    %v909 = vunpack.c.l.b16 %v324
    %v910 = vunpack.c.h.b16 %v324
    %v911 = vunpack.c.l.b16 %v325
    %v912 = vunpack.c.h.b16 %v325
    %v913 = vunpack.c.l.b16 %v326
    %v914 = vunpack.c.h.b16 %v326
    %v915 = vunpack.c.l.b16 %v327
    %v916 = vunpack.c.h.b16 %v327
    %v917 = vunpack.c.l.b16 %v328
    %v918 = vunpack.c.h.b16 %v328
    %v919 = vunpack.c.l.b16 %v329
    %v920 = vunpack.c.h.b16 %v329
    %v921 = vunpack.c.l.b16 %v330
    %v922 = vunpack.c.h.b16 %v330
    %v923 = vunpack.c.l.b16 %v331
    %v924 = vunpack.c.h.b16 %v331
    %v925 = vunpack.c.l.b16 %v332
    %v926 = vunpack.c.h.b16 %v332
    %v927 = vunpack.c.l.b16 %v333
    %v928 = vunpack.c.h.b16 %v333
    %v929 = vunpack.c.l.b16 %v334
    %v930 = vunpack.c.h.b16 %v334
    %v931 = vunpack.c.l.b16 %v335
    %v932 = vunpack.c.h.b16 %v335
    %v933 = vunpack.c.l.b16 %v336
    %v934 = vunpack.c.h.b16 %v336
    %v935 = vunpack.c.l.b16 %v337
    %v936 = vunpack.c.h.b16 %v337
    %v937 = vunpack.c.l.b16 %v338
    %v938 = vunpack.c.h.b16 %v338
    %v939 = vunpack.c.l.b16 %v339
    %v940 = vunpack.c.h.b16 %v339
    %v941 = vunpack.c.l.b16 %v340
    %v942 = vunpack.c.h.b16 %v340
    %v943 = vunpack.c.l.b16 %v341
    %v944 = vunpack.c.h.b16 %v341
    %v945 = vunpack.c.l.b16 %v342
    %v946 = vunpack.c.h.b16 %v342
    %v947 = vunpack.c.l.b16 %v343
    %v948 = vunpack.c.h.b16 %v343
    %v949 = vunpack.c.l.b16 %v344
    %v950 = vunpack.c.h.b16 %v344
    %v951 = vunpack.c.l.b16 %v345
    %v952 = vunpack.c.h.b16 %v345
    %v953 = vunpack.c.l.b16 %v346
    %v954 = vunpack.c.h.b16 %v346
    %v955 = vunpack.c.l.b16 %v347
    %v956 = vunpack.c.h.b16 %v347
    %v957 = vunpack.c.l.b16 %v348
    %v958 = vunpack.c.h.b16 %v348
    %v959 = vpack.c.b16 %v571, %v567
    %v960 = vpack.c.b16 %v572, %v568
    %v961 = vpack.c.b16 %v573, %v569
    %v962 = vpack.c.b16 %v574, %v570
    %v963 = vpack.c.b16 %v579, %v575
    %v964 = vpack.c.b16 %v580, %v576
    %v965 = vpack.c.b16 %v581, %v577
    %v966 = vpack.c.b16 %v582, %v578
    %v967 = vpack.c.b16 %v587, %v583
    %v968 = vpack.c.b16 %v588, %v584
    %v969 = vpack.c.b16 %v589, %v585
    %v970 = vpack.c.b16 %v590, %v586
    %v971 = vpack.c.b16 %v595, %v591
    %v972 = vpack.c.b16 %v596, %v592
    %v973 = vpack.c.b16 %v597, %v593
    %v974 = vpack.c.b16 %v598, %v594
    %v975 = vpack.c.b16 %v603, %v599
    %v976 = vpack.c.b16 %v604, %v600
    %v977 = vpack.c.b16 %v605, %v601
    %v978 = vpack.c.b16 %v606, %v602
    %v979 = vpack.c.b16 %v611, %v607
    %v980 = vpack.c.b16 %v612, %v608
    %v981 = vpack.c.b16 %v613, %v609
    %v982 = vpack.c.b16 %v614, %v610
    %v983 = vpack.c.b16 %v619, %v615
    %v984 = vpack.c.b16 %v620, %v616
    %v985 = vpack.c.b16 %v621, %v617
    %v986 = vpack.c.b16 %v622, %v618
    %v987 = vpack.c.b16 %v627, %v623
    %v988 = vpack.c.b16 %v628, %v624
    %v989 = vpack.c.b16 %v629, %v625
    %v990 = vpack.c.b16 %v630, %v626
    %v991 = vpack.c.b16 %v635, %v631
    %v992 = vpack.c.b16 %v636, %v632
    %v993 = vpack.c.b16 %v637, %v633
    %v994 = vpack.c.b16 %v638, %v634
    %v995 = vpack.c.b16 %v643, %v639
    %v996 = vpack.c.b16 %v644, %v640
    %v997 = vpack.c.b16 %v645, %v641
    %v998 = vpack.c.b16 %v646, %v642
    %v999 = vpack.c.b16 %v651, %v647
    %v1000 = vpack.c.b16 %v652, %v648
    %v1001 = vpack.c.b16 %v653, %v649
    %v1002 = vpack.c.b16 %v654, %v650
    %v1003 = vpack.c.b16 %v659, %v655
    %v1004 = vpack.c.b16 %v660, %v656
    %v1005 = vpack.c.b16 %v661, %v657
    %v1006 = vpack.c.b16 %v662, %v658
    %v1007 = vpack.c.b16 %v667, %v663
    %v1008 = vpack.c.b16 %v668, %v664
    %v1009 = vpack.c.b16 %v669, %v665
    %v1010 = vpack.c.b16 %v670, %v666
    %v1011 = vpack.c.b16 %v675, %v671
    %v1012 = vpack.c.b16 %v676, %v672
    %v1013 = vpack.c.b16 %v677, %v673
    %v1014 = vpack.c.b16 %v678, %v674
    %v1015 = vpack.c.b16 %v683, %v679
    %v1016 = vpack.c.b16 %v684, %v680
    %v1017 = vpack.c.b16 %v685, %v681
    %v1018 = vpack.c.b16 %v686, %v682
    %v1019 = vpack.c.b16 %v691, %v687
    %v1020 = vpack.c.b16 %v692, %v688
    %v1021 = vpack.c.b16 %v693, %v689
    %v1022 = vpack.c.b16 %v694, %v690
    %v1023 = vpack.c.b16 %v699, %v695
    %v1024 = vpack.c.b16 %v700, %v696
    %v1025 = vpack.c.b16 %v701, %v697
    %v1026 = vpack.c.b16 %v702, %v698
    %v1027 = vpack.c.b16 %v707, %v703
    %v1028 = vpack.c.b16 %v708, %v704
    %v1029 = vpack.c.b16 %v709, %v705
    %v1030 = vpack.c.b16 %v710, %v706
    %v1031 = vpack.c.b16 %v715, %v711
    %v1032 = vpack.c.b16 %v716, %v712
    %v1033 = vpack.c.b16 %v717, %v713
    %v1034 = vpack.c.b16 %v718, %v714
    %v1035 = vpack.c.b16 %v723, %v719
    %v1036 = vpack.c.b16 %v724, %v720
    %v1037 = vpack.c.b16 %v725, %v721
    %v1038 = vpack.c.b16 %v726, %v722
    %v1039 = vpack.c.b16 %v731, %v727
    %v1040 = vpack.c.b16 %v732, %v728
    %v1041 = vpack.c.b16 %v733, %v729
    %v1042 = vpack.c.b16 %v734, %v730
    %v1043 = vpack.c.b16 %v739, %v735
    %v1044 = vpack.c.b16 %v740, %v736
    %v1045 = vpack.c.b16 %v741, %v737
    %v1046 = vpack.c.b16 %v742, %v738
    %v1047 = vpack.c.b16 %v747, %v743
    %v1048 = vpack.c.b16 %v748, %v744
    %v1049 = vpack.c.b16 %v749, %v745
    %v1050 = vpack.c.b16 %v750, %v746
    %v1051 = vpack.c.b16 %v755, %v751
    %v1052 = vpack.c.b16 %v756, %v752
    %v1053 = vpack.c.b16 %v757, %v753
    %v1054 = vpack.c.b16 %v758, %v754
    %v1055 = vpack.c.b16 %v763, %v759
    %v1056 = vpack.c.b16 %v764, %v760
    %v1057 = vpack.c.b16 %v765, %v761
    %v1058 = vpack.c.b16 %v766, %v762
    %v1059 = vpack.c.b16 %v771, %v767
    %v1060 = vpack.c.b16 %v772, %v768
    %v1061 = vpack.c.b16 %v773, %v769
    %v1062 = vpack.c.b16 %v774, %v770
    %v1063 = vpack.c.b16 %v779, %v775
    %v1064 = vpack.c.b16 %v780, %v776
    %v1065 = vpack.c.b16 %v781, %v777
    %v1066 = vpack.c.b16 %v782, %v778
    %v1067 = vpack.c.b16 %v787, %v783
    %v1068 = vpack.c.b16 %v788, %v784
    %v1069 = vpack.c.b16 %v789, %v785
    %v1070 = vpack.c.b16 %v790, %v786
    %v1071 = vpack.c.b16 %v795, %v791
    %v1072 = vpack.c.b16 %v796, %v792
    %v1073 = vpack.c.b16 %v797, %v793
    %v1074 = vpack.c.b16 %v798, %v794
    %v1075 = vpack.c.b16 %v803, %v799
    %v1076 = vpack.c.b16 %v804, %v800
    %v1077 = vpack.c.b16 %v805, %v801
    %v1078 = vpack.c.b16 %v806, %v802
    %v1079 = vpack.c.b16 %v811, %v807
    %v1080 = vpack.c.b16 %v812, %v808
    %v1081 = vpack.c.b16 %v813, %v809
    %v1082 = vpack.c.b16 %v814, %v810
    %v1083 = vpack.c.b16 %v819, %v815
    %v1084 = vpack.c.b16 %v820, %v816
    %v1085 = vpack.c.b16 %v821, %v817
    %v1086 = vpack.c.b16 %v822, %v818
    %v1087 = vpack.c.b16 %v827, %v823
    %v1088 = vpack.c.b16 %v828, %v824
    %v1089 = vpack.c.b16 %v829, %v825
    %v1090 = vpack.c.b16 %v830, %v826
    %v1091 = vpack.c.b16 %v835, %v831
    %v1092 = vpack.c.b16 %v836, %v832
    %v1093 = vpack.c.b16 %v837, %v833
    %v1094 = vpack.c.b16 %v838, %v834
    %v1095 = vpack.c.b16 %v843, %v839
    %v1096 = vpack.c.b16 %v844, %v840
    %v1097 = vpack.c.b16 %v845, %v841
    %v1098 = vpack.c.b16 %v846, %v842
    %v1099 = vpack.c.b16 %v851, %v847
    %v1100 = vpack.c.b16 %v852, %v848
    %v1101 = vpack.c.b16 %v853, %v849
    %v1102 = vpack.c.b16 %v854, %v850
    %v1103 = vpack.c.b16 %v859, %v855
    %v1104 = vpack.c.b16 %v860, %v856
    %v1105 = vpack.c.b16 %v861, %v857
    %v1106 = vpack.c.b16 %v862, %v858
    %v1107 = vpack.c.b16 %v867, %v863
    %v1108 = vpack.c.b16 %v868, %v864
    %v1109 = vpack.c.b16 %v869, %v865
    %v1110 = vpack.c.b16 %v870, %v866
    %v1111 = vpack.c.b16 %v875, %v871
    %v1112 = vpack.c.b16 %v876, %v872
    %v1113 = vpack.c.b16 %v877, %v873
    %v1114 = vpack.c.b16 %v878, %v874
    %v1115 = vpack.c.b16 %v883, %v879
    %v1116 = vpack.c.b16 %v884, %v880
    %v1117 = vpack.c.b16 %v885, %v881
    %v1118 = vpack.c.b16 %v886, %v882
    %v1119 = vpack.c.b16 %v891, %v887
    %v1120 = vpack.c.b16 %v892, %v888
    %v1121 = vpack.c.b16 %v893, %v889
    %v1122 = vpack.c.b16 %v894, %v890
    %v1123 = vpack.c.b16 %v899, %v895
    %v1124 = vpack.c.b16 %v900, %v896
    %v1125 = vpack.c.b16 %v901, %v897
    %v1126 = vpack.c.b16 %v902, %v898
    %v1127 = vpack.c.b16 %v907, %v903
    %v1128 = vpack.c.b16 %v908, %v904
    %v1129 = vpack.c.b16 %v909, %v905
    %v1130 = vpack.c.b16 %v910, %v906
    %v1131 = vpack.c.b16 %v915, %v911
    %v1132 = vpack.c.b16 %v916, %v912
    %v1133 = vpack.c.b16 %v917, %v913
    %v1134 = vpack.c.b16 %v918, %v914
    %v1135 = vpack.c.b16 %v923, %v919
    %v1136 = vpack.c.b16 %v924, %v920
    %v1137 = vpack.c.b16 %v925, %v921
    %v1138 = vpack.c.b16 %v926, %v922
    %v1139 = vpack.c.b16 %v931, %v927
    %v1140 = vpack.c.b16 %v932, %v928
    %v1141 = vpack.c.b16 %v933, %v929
    %v1142 = vpack.c.b16 %v934, %v930
    %v1143 = vpack.c.b16 %v939, %v935
    %v1144 = vpack.c.b16 %v940, %v936
    %v1145 = vpack.c.b16 %v941, %v937
    %v1146 = vpack.c.b16 %v942, %v938
    %v1147 = vpack.c.b16 %v947, %v943
    %v1148 = vpack.c.b16 %v948, %v944
    %v1149 = vpack.c.b16 %v949, %v945
    %v1150 = vpack.c.b16 %v950, %v946
    %v1151 = vpack.c.b16 %v955, %v951
    %v1152 = vpack.c.b16 %v956, %v952
    %v1153 = vpack.c.b16 %v957, %v953
    %v1154 = vpack.c.b16 %v958, %v954
    %vm1351 = vcmask 130048
    %v1353 = vsel %vm1351, %v131, 0
    %v1356 = vsel %vm1351, %v138, 0
    %v1359 = vsel %vm1351, %v145, 0
    %v1362 = vsel %vm1351, %v152, 0
    %1364 = vmatprep.subr.bf16.mxu0 %v960
    %1365 = vmatpush1.bf16.msra.mxu0 %v959
    %1366 = vmatprep.subr.bf16.mxu0 %v964
    %1367 = vmatpush1.bf16.msra.mxu0 %v963
    %1368 = vmatprep.subr.bf16.mxu0 %v968
    %1369 = vmatpush1.bf16.msra.mxu0 %v967
    %1370 = vmatprep.subr.bf16.mxu0 %v972
    %1371 = vmatpush1.bf16.msra.mxu0 %v971
    %1372 = vmatprep.subr.bf16.mxu0 %v976
    %1373 = vmatpush1.bf16.msra.mxu0 %v975
    %1374 = vmatprep.subr.bf16.mxu0 %v980
    %1375 = vmatpush1.bf16.msra.mxu0 %v979
    %1376 = vmatprep.subr.bf16.mxu0 %v984
    %1377 = vmatpush1.bf16.msra.mxu0 %v983
    %1378 = vmatprep.subr.bf16.mxu0 %v988
    %1379 = vmatpush1.bf16.msra.mxu0 %v987
    %1380 = vmatprep.subr.bf16.mxu0 %v992
    %1381 = vmatpush1.bf16.msra.mxu0 %v991
    %1382 = vmatprep.subr.bf16.mxu0 %v996
    %1383 = vmatpush1.bf16.msra.mxu0 %v995
    %1384 = vmatprep.subr.bf16.mxu0 %v1000
    %1385 = vmatpush1.bf16.msra.mxu0 %v999
    %1386 = vmatprep.subr.bf16.mxu0 %v1004
    %1387 = vmatpush1.bf16.msra.mxu0 %v1003
    %1388 = vmatprep.subr.bf16.mxu0 %v1008
    %1389 = vmatpush1.bf16.msra.mxu0 %v1007
    %1390 = vmatprep.subr.bf16.mxu0 %v1012
    %1391 = vmatpush1.bf16.msra.mxu0 %v1011
    %1392 = vmatprep.subr.bf16.mxu0 %v1016
    %1393 = vmatpush1.bf16.msra.mxu0 %v1015
    %1394 = vmatprep.subr.bf16.mxu0 %v1020
    %1395 = vmatpush1.bf16.msra.mxu0 %v1019
    %1396 = vmatprep.mubr.bf16.mxu0 %v126
    %1397 = vmatmul.mubr.bf16.gmra.mrb[0].mxu0 %v125
    %v1398 = vpop.f32.mrb[0].mxu0
    %v1399 = vadd.f32 %v354, %v1398
    %v1400 = vpop.f32.mrb[0].mxu0
    %v1401 = vadd.f32 %v358, %v1400
    %v1402 = vpop.f32.mrb[0].mxu0
    %v1403 = vadd.f32 %v354, %v1402
    %v1404 = vpop.f32.mrb[0].mxu0
    %v1405 = vadd.f32 %v358, %v1404
    %1406 = vmatprep.mubr.bf16.mxu0 %v133
    %1407 = vmatmul.mubr.bf16.gmra.mrb[0].mxu0 %v132
    %v1408 = vpop.f32.mrb[0].mxu0
    %v1409 = vadd.f32 %v354, %v1408
    %v1410 = vpop.f32.mrb[0].mxu0
    %v1411 = vadd.f32 %v358, %v1410
    %v1412 = vpop.f32.mrb[0].mxu0
    %v1413 = vadd.f32 %v354, %v1412
    %v1414 = vpop.f32.mrb[0].mxu0
    %v1415 = vadd.f32 %v358, %v1414
    %1416 = vmatprep.mubr.bf16.mxu0 %v140
    %1417 = vmatmul.mubr.bf16.gmra.mrb[0].mxu0 %v139
    %v1418 = vpop.f32.mrb[0].mxu0
    %v1419 = vadd.f32 %v354, %v1418
    %v1420 = vpop.f32.mrb[0].mxu0
    %v1421 = vadd.f32 %v358, %v1420
    %v1422 = vpop.f32.mrb[0].mxu0
    %v1423 = vadd.f32 %v354, %v1422
    %v1424 = vpop.f32.mrb[0].mxu0
    %v1425 = vadd.f32 %v358, %v1424
    %1426 = vmatprep.mubr.bf16.mxu0 %v147
    %1427 = vmatmul.mubr.bf16.gmra.mrb[0].mxu0 %v146
    %v1428 = vpop.f32.mrb[0].mxu0
    %v1429 = vadd.f32 %v354, %v1428
    %v1430 = vpop.f32.mrb[0].mxu0
    %v1431 = vadd.f32 %v358, %v1430
    %v1432 = vpop.f32.mrb[0].mxu0
    %v1433 = vadd.f32 %v354, %v1432
    %v1434 = vpop.f32.mrb[0].mxu0
    %v1435 = vadd.f32 %v358, %v1434
    %1436 = vdwg.mxu0
    %1437 = vmatprep.subr.bf16.mxu0 %v1024
    %1438 = vmatpush1.bf16.msra.mxu0 %v1023
    %1439 = vmatprep.subr.bf16.mxu0 %v1028
    %1440 = vmatpush1.bf16.msra.mxu0 %v1027
    %1441 = vmatprep.subr.bf16.mxu0 %v1032
    %1442 = vmatpush1.bf16.msra.mxu0 %v1031
    %1443 = vmatprep.subr.bf16.mxu0 %v1036
    %1444 = vmatpush1.bf16.msra.mxu0 %v1035
    %1445 = vmatprep.subr.bf16.mxu0 %v1040
    %1446 = vmatpush1.bf16.msra.mxu0 %v1039
    %1447 = vmatprep.subr.bf16.mxu0 %v1044
    %1448 = vmatpush1.bf16.msra.mxu0 %v1043
    %1449 = vmatprep.subr.bf16.mxu0 %v1048
    %1450 = vmatpush1.bf16.msra.mxu0 %v1047
    %1451 = vmatprep.subr.bf16.mxu0 %v1052
    %1452 = vmatpush1.bf16.msra.mxu0 %v1051
    %1453 = vmatprep.subr.bf16.mxu0 %v1056
    %1454 = vmatpush1.bf16.msra.mxu0 %v1055
    %1455 = vmatprep.subr.bf16.mxu0 %v1060
    %1456 = vmatpush1.bf16.msra.mxu0 %v1059
    %1457 = vmatprep.subr.bf16.mxu0 %v1064
    %1458 = vmatpush1.bf16.msra.mxu0 %v1063
    %1459 = vmatprep.subr.bf16.mxu0 %v1068
    %1460 = vmatpush1.bf16.msra.mxu0 %v1067
    %1461 = vmatprep.subr.bf16.mxu0 %v1072
    %1462 = vmatpush1.bf16.msra.mxu0 %v1071
    %1463 = vmatprep.subr.bf16.mxu0 %v1076
    %1464 = vmatpush1.bf16.msra.mxu0 %v1075
    %1465 = vmatprep.subr.bf16.mxu0 %v1080
    %1466 = vmatpush1.bf16.msra.mxu0 %v1079
    %1467 = vmatprep.subr.bf16.mxu0 %v1084
    %1468 = vmatpush1.bf16.msra.mxu0 %v1083
    %1469 = vmatprep.mubr.bf16.mxu0 %v128
    %1470 = vmatmul.mubr.bf16.gmra.mrb[0].mxu0 %v127
    %v1471 = vpop.f32.mrb[0].mxu0
    %v1472 = vadd.f32 %v1399, %v1471
    %v1473 = vpop.f32.mrb[0].mxu0
    %v1474 = vadd.f32 %v1401, %v1473
    %v1475 = vpop.f32.mrb[0].mxu0
    %v1476 = vadd.f32 %v1403, %v1475
    %v1477 = vpop.f32.mrb[0].mxu0
    %v1478 = vadd.f32 %v1405, %v1477
    %1479 = vmatprep.mubr.bf16.mxu0 %v135
    %1480 = vmatmul.mubr.bf16.gmra.mrb[0].mxu0 %v134
    %v1481 = vpop.f32.mrb[0].mxu0
    %v1482 = vadd.f32 %v1409, %v1481
    %v1483 = vpop.f32.mrb[0].mxu0
    %v1484 = vadd.f32 %v1411, %v1483
    %v1485 = vpop.f32.mrb[0].mxu0
    %v1486 = vadd.f32 %v1413, %v1485
    %v1487 = vpop.f32.mrb[0].mxu0
    %v1488 = vadd.f32 %v1415, %v1487
    %1489 = vmatprep.mubr.bf16.mxu0 %v142
    %1490 = vmatmul.mubr.bf16.gmra.mrb[0].mxu0 %v141
    %v1491 = vpop.f32.mrb[0].mxu0
    %v1492 = vadd.f32 %v1419, %v1491
    %v1493 = vpop.f32.mrb[0].mxu0
    %v1494 = vadd.f32 %v1421, %v1493
    %v1495 = vpop.f32.mrb[0].mxu0
    %v1496 = vadd.f32 %v1423, %v1495
    %v1497 = vpop.f32.mrb[0].mxu0
    %v1498 = vadd.f32 %v1425, %v1497
    %1499 = vmatprep.mubr.bf16.mxu0 %v149
    %1500 = vmatmul.mubr.bf16.gmra.mrb[0].mxu0 %v148
    %v1501 = vpop.f32.mrb[0].mxu0
    %v1502 = vadd.f32 %v1429, %v1501
    %v1503 = vpop.f32.mrb[0].mxu0
    %v1504 = vadd.f32 %v1431, %v1503
    %v1505 = vpop.f32.mrb[0].mxu0
    %v1506 = vadd.f32 %v1433, %v1505
    %v1507 = vpop.f32.mrb[0].mxu0
    %v1508 = vadd.f32 %v1435, %v1507
    %1509 = vdwg.mxu0
    %1510 = vmatprep.subr.bf16.mxu0 %v1088
    %1511 = vmatpush1.bf16.msra.mxu0 %v1087
    %1512 = vmatprep.subr.bf16.mxu0 %v1092
    %1513 = vmatpush1.bf16.msra.mxu0 %v1091
    %1514 = vmatprep.subr.bf16.mxu0 %v1096
    %1515 = vmatpush1.bf16.msra.mxu0 %v1095
    %1516 = vmatprep.subr.bf16.mxu0 %v1100
    %1517 = vmatpush1.bf16.msra.mxu0 %v1099
    %1518 = vmatprep.subr.bf16.mxu0 %v1104
    %1519 = vmatpush1.bf16.msra.mxu0 %v1103
    %1520 = vmatprep.subr.bf16.mxu0 %v1108
    %1521 = vmatpush1.bf16.msra.mxu0 %v1107
    %1522 = vmatprep.subr.bf16.mxu0 %v1112
    %1523 = vmatpush1.bf16.msra.mxu0 %v1111
    %1524 = vmatprep.subr.bf16.mxu0 %v1116
    %1525 = vmatpush1.bf16.msra.mxu0 %v1115
    %1526 = vmatprep.subr.bf16.mxu0 %v1120
    %1527 = vmatpush1.bf16.msra.mxu0 %v1119
    %1528 = vmatprep.subr.bf16.mxu0 %v1124
    %1529 = vmatpush1.bf16.msra.mxu0 %v1123
    %1530 = vmatprep.subr.bf16.mxu0 %v1128
    %1531 = vmatpush1.bf16.msra.mxu0 %v1127
    %1532 = vmatprep.subr.bf16.mxu0 %v1132
    %1533 = vmatpush1.bf16.msra.mxu0 %v1131
    %1534 = vmatprep.subr.bf16.mxu0 %v1136
    %1535 = vmatpush1.bf16.msra.mxu0 %v1135
    %1536 = vmatprep.subr.bf16.mxu0 %v1140
    %1537 = vmatpush1.bf16.msra.mxu0 %v1139
    %1538 = vmatprep.subr.bf16.mxu0 %v1144
    %1539 = vmatpush1.bf16.msra.mxu0 %v1143
    %1540 = vmatprep.subr.bf16.mxu0 %v1148
    %1541 = vmatpush1.bf16.msra.mxu0 %v1147
    %1542 = vmatprep.mubr.bf16.mxu0 %v130
    %1543 = vmatmul.mubr.bf16.gmra.mrb[0].mxu0 %v129
    %v1544 = vpop.f32.mrb[0].mxu0
    %v1545 = vadd.f32 %v1472, %v1544
    %v1546 = vpop.f32.mrb[0].mxu0
    %v1547 = vadd.f32 %v1474, %v1546
    %v1548 = vpop.f32.mrb[0].mxu0
    %v1549 = vadd.f32 %v1476, %v1548
    %v1550 = vpop.f32.mrb[0].mxu0
    %v1551 = vadd.f32 %v1478, %v1550
    %1552 = vmatprep.mubr.bf16.mxu0 %v137
    %1553 = vmatmul.mubr.bf16.gmra.mrb[0].mxu0 %v136
    %v1554 = vpop.f32.mrb[0].mxu0
    %v1555 = vadd.f32 %v1482, %v1554
    %v1556 = vpop.f32.mrb[0].mxu0
    %v1557 = vadd.f32 %v1484, %v1556
    %v1558 = vpop.f32.mrb[0].mxu0
    %v1559 = vadd.f32 %v1486, %v1558
    %v1560 = vpop.f32.mrb[0].mxu0
    %v1561 = vadd.f32 %v1488, %v1560
    %1562 = vmatprep.mubr.bf16.mxu0 %v144
    %1563 = vmatmul.mubr.bf16.gmra.mrb[0].mxu0 %v143
    %v1564 = vpop.f32.mrb[0].mxu0
    %v1565 = vadd.f32 %v1492, %v1564
    %v1566 = vpop.f32.mrb[0].mxu0
    %v1567 = vadd.f32 %v1494, %v1566
    %v1568 = vpop.f32.mrb[0].mxu0
    %v1569 = vadd.f32 %v1496, %v1568
    %v1570 = vpop.f32.mrb[0].mxu0
    %v1571 = vadd.f32 %v1498, %v1570
    %1572 = vmatprep.mubr.bf16.mxu0 %v151
    %1573 = vmatmul.mubr.bf16.gmra.mrb[0].mxu0 %v150
    %v1574 = vpop.f32.mrb[0].mxu0
    %v1575 = vadd.f32 %v1502, %v1574
    %v1576 = vpop.f32.mrb[0].mxu0
    %v1577 = vadd.f32 %v1504, %v1576
    %v1578 = vpop.f32.mrb[0].mxu0
    %v1579 = vadd.f32 %v1506, %v1578
    %v1580 = vpop.f32.mrb[0].mxu0
    %v1581 = vadd.f32 %v1508, %v1580
    %1582 = vdwg.mxu0
    %1583 = vmatprep.subr.bf16.mxu0 %v1152
    %1584 = vmatpush1.bf16.msra.mxu0 %v1151
    %1585 = vmatprep.subr.bf16.mxu0 0
    %1586 = vmatpush1.bf16.msra.mxu0 0
    %1587 = vmatprep.subr.bf16.mxu0 0
    %1588 = vmatpush1.bf16.msra.mxu0 0
    %1589 = vmatprep.subr.bf16.mxu0 0
    %1590 = vmatpush1.bf16.msra.mxu0 0
    %1591 = vmatprep.subr.bf16.mxu0 0
    %1592 = vmatpush1.bf16.msra.mxu0 0
    %1593 = vmatprep.subr.bf16.mxu0 0
    %1594 = vmatpush1.bf16.msra.mxu0 0
    %1595 = vmatprep.subr.bf16.mxu0 0
    %1596 = vmatpush1.bf16.msra.mxu0 0
    %1597 = vmatprep.subr.bf16.mxu0 0
    %1598 = vmatpush1.bf16.msra.mxu0 0
    %1599 = vmatprep.subr.bf16.mxu0 0
    %1600 = vmatpush1.bf16.msra.mxu0 0
    %1601 = vmatprep.subr.bf16.mxu0 0
    %1602 = vmatpush1.bf16.msra.mxu0 0
    %1603 = vmatprep.subr.bf16.mxu0 0
    %1604 = vmatpush1.bf16.msra.mxu0 0
    %1605 = vmatprep.subr.bf16.mxu0 0
    %1606 = vmatpush1.bf16.msra.mxu0 0
    %1607 = vmatprep.subr.bf16.mxu0 0
    %1608 = vmatpush1.bf16.msra.mxu0 0
    %1609 = vmatprep.subr.bf16.mxu0 0
    %1610 = vmatpush1.bf16.msra.mxu0 0
    %1611 = vmatprep.subr.bf16.mxu0 0
    %1612 = vmatpush1.bf16.msra.mxu0 0
    %1613 = vmatprep.subr.bf16.mxu0 0
    %1614 = vmatpush1.bf16.msra.mxu0 0
    %1615 = vmatprep.mubr.bf16.mxu0 0
    %1616 = vmatmul.mubr.bf16.gmra.mrb[0].mxu0 %v1353
    %v1617 = vpop.f32.mrb[0].mxu0
    %v1618 = vadd.f32 %v1545, %v1617
    %v1619 = vpop.f32.mrb[0].mxu0
    %v1620 = vadd.f32 %v1547, %v1619
    %v1621 = vpop.f32.mrb[0].mxu0
    %v1622 = vadd.f32 %v1549, %v1621
    %v1623 = vpop.f32.mrb[0].mxu0
    %v1624 = vadd.f32 %v1551, %v1623
    %1625 = vmatprep.mubr.bf16.mxu0 0
    %1626 = vmatmul.mubr.bf16.gmra.mrb[0].mxu0 %v1356
    %v1627 = vpop.f32.mrb[0].mxu0
    %v1628 = vadd.f32 %v1555, %v1627
    %v1629 = vpop.f32.mrb[0].mxu0
    %v1630 = vadd.f32 %v1557, %v1629
    %v1631 = vpop.f32.mrb[0].mxu0
    %v1632 = vadd.f32 %v1559, %v1631
    %v1633 = vpop.f32.mrb[0].mxu0
    %v1634 = vadd.f32 %v1561, %v1633
    %1635 = vmatprep.mubr.bf16.mxu0 0
    %1636 = vmatmul.mubr.bf16.gmra.mrb[0].mxu0 %v1359
    %v1637 = vpop.f32.mrb[0].mxu0
    %v1638 = vadd.f32 %v1565, %v1637
    %v1639 = vpop.f32.mrb[0].mxu0
    %v1640 = vadd.f32 %v1567, %v1639
    %v1641 = vpop.f32.mrb[0].mxu0
    %v1642 = vadd.f32 %v1569, %v1641
    %v1643 = vpop.f32.mrb[0].mxu0
    %v1644 = vadd.f32 %v1571, %v1643
    %1645 = vmatprep.mubr.bf16.mxu0 0
    %1646 = vmatmul.mubr.bf16.gmra.mrb[0].mxu0 %v1362
    %v1647 = vpop.f32.mrb[0].mxu0
    %v1648 = vadd.f32 %v1575, %v1647
    %v1649 = vpop.f32.mrb[0].mxu0
    %v1650 = vadd.f32 %v1577, %v1649
    %v1651 = vpop.f32.mrb[0].mxu0
    %v1652 = vadd.f32 %v1579, %v1651
    %v1653 = vpop.f32.mrb[0].mxu0
    %v1654 = vadd.f32 %v1581, %v1653
    %1655 = vdwg.mxu0
    %1656 = vmatprep.subr.bf16.mxu0 %v962
    %1657 = vmatpush1.bf16.msra.mxu0 %v961
    %1658 = vmatprep.subr.bf16.mxu0 %v966
    %1659 = vmatpush1.bf16.msra.mxu0 %v965
    %1660 = vmatprep.subr.bf16.mxu0 %v970
    %1661 = vmatpush1.bf16.msra.mxu0 %v969
    %1662 = vmatprep.subr.bf16.mxu0 %v974
    %1663 = vmatpush1.bf16.msra.mxu0 %v973
    %1664 = vmatprep.subr.bf16.mxu0 %v978
    %1665 = vmatpush1.bf16.msra.mxu0 %v977
    %1666 = vmatprep.subr.bf16.mxu0 %v982
    %1667 = vmatpush1.bf16.msra.mxu0 %v981
    %1668 = vmatprep.subr.bf16.mxu0 %v986
    %1669 = vmatpush1.bf16.msra.mxu0 %v985
    %1670 = vmatprep.subr.bf16.mxu0 %v990
    %1671 = vmatpush1.bf16.msra.mxu0 %v989
    %1672 = vmatprep.subr.bf16.mxu0 %v994
    %1673 = vmatpush1.bf16.msra.mxu0 %v993
    %1674 = vmatprep.subr.bf16.mxu0 %v998
    %1675 = vmatpush1.bf16.msra.mxu0 %v997
    %1676 = vmatprep.subr.bf16.mxu0 %v1002
    %1677 = vmatpush1.bf16.msra.mxu0 %v1001
    %1678 = vmatprep.subr.bf16.mxu0 %v1006
    %1679 = vmatpush1.bf16.msra.mxu0 %v1005
    %1680 = vmatprep.subr.bf16.mxu0 %v1010
    %1681 = vmatpush1.bf16.msra.mxu0 %v1009
    %1682 = vmatprep.subr.bf16.mxu0 %v1014
    %1683 = vmatpush1.bf16.msra.mxu0 %v1013
    %1684 = vmatprep.subr.bf16.mxu0 %v1018
    %1685 = vmatpush1.bf16.msra.mxu0 %v1017
    %1686 = vmatprep.subr.bf16.mxu0 %v1022
    %1687 = vmatpush1.bf16.msra.mxu0 %v1021
    %1688 = vmatprep.mubr.bf16.mxu0 %v126
    %1689 = vmatmul.mubr.bf16.gmra.mrb[0].mxu0 %v125
    %v1690 = vpop.f32.mrb[0].mxu0
    %v1691 = vadd.f32 %v362, %v1690
    %v1692 = vpop.f32.mrb[0].mxu0
    %v1693 = vadd.f32 %v366, %v1692
    %v1694 = vpop.f32.mrb[0].mxu0
    %v1695 = vadd.f32 %v362, %v1694
    %v1696 = vpop.f32.mrb[0].mxu0
    %v1697 = vadd.f32 %v366, %v1696
    %1698 = vmatprep.mubr.bf16.mxu0 %v133
    %1699 = vmatmul.mubr.bf16.gmra.mrb[0].mxu0 %v132
    %v1700 = vpop.f32.mrb[0].mxu0
    %v1701 = vadd.f32 %v362, %v1700
    %v1702 = vpop.f32.mrb[0].mxu0
    %v1703 = vadd.f32 %v366, %v1702
    %v1704 = vpop.f32.mrb[0].mxu0
    %v1705 = vadd.f32 %v362, %v1704
    %v1706 = vpop.f32.mrb[0].mxu0
    %v1707 = vadd.f32 %v366, %v1706
    %1708 = vmatprep.mubr.bf16.mxu0 %v140
    %1709 = vmatmul.mubr.bf16.gmra.mrb[0].mxu0 %v139
    %v1710 = vpop.f32.mrb[0].mxu0
    %v1711 = vadd.f32 %v362, %v1710
    %v1712 = vpop.f32.mrb[0].mxu0
    %v1713 = vadd.f32 %v366, %v1712
    %v1714 = vpop.f32.mrb[0].mxu0
    %v1715 = vadd.f32 %v362, %v1714
    %v1716 = vpop.f32.mrb[0].mxu0
    %v1717 = vadd.f32 %v366, %v1716
    %1718 = vmatprep.mubr.bf16.mxu0 %v147
    %1719 = vmatmul.mubr.bf16.gmra.mrb[0].mxu0 %v146
    %v1720 = vpop.f32.mrb[0].mxu0
    %v1721 = vadd.f32 %v362, %v1720
    %v1722 = vpop.f32.mrb[0].mxu0
    %v1723 = vadd.f32 %v366, %v1722
    %v1724 = vpop.f32.mrb[0].mxu0
    %v1725 = vadd.f32 %v362, %v1724
    %v1726 = vpop.f32.mrb[0].mxu0
    %v1727 = vadd.f32 %v366, %v1726
    %1728 = vdwg.mxu0
    %1729 = vmatprep.subr.bf16.mxu0 %v1026
    %1730 = vmatpush1.bf16.msra.mxu0 %v1025
    %1731 = vmatprep.subr.bf16.mxu0 %v1030
    %1732 = vmatpush1.bf16.msra.mxu0 %v1029
    %1733 = vmatprep.subr.bf16.mxu0 %v1034
    %1734 = vmatpush1.bf16.msra.mxu0 %v1033
    %1735 = vmatprep.subr.bf16.mxu0 %v1038
    %1736 = vmatpush1.bf16.msra.mxu0 %v1037
    %1737 = vmatprep.subr.bf16.mxu0 %v1042
    %1738 = vmatpush1.bf16.msra.mxu0 %v1041
    %1739 = vmatprep.subr.bf16.mxu0 %v1046
    %1740 = vmatpush1.bf16.msra.mxu0 %v1045
    %1741 = vmatprep.subr.bf16.mxu0 %v1050
    %1742 = vmatpush1.bf16.msra.mxu0 %v1049
    %1743 = vmatprep.subr.bf16.mxu0 %v1054
    %1744 = vmatpush1.bf16.msra.mxu0 %v1053
    %1745 = vmatprep.subr.bf16.mxu0 %v1058
    %1746 = vmatpush1.bf16.msra.mxu0 %v1057
    %1747 = vmatprep.subr.bf16.mxu0 %v1062
    %1748 = vmatpush1.bf16.msra.mxu0 %v1061
    %1749 = vmatprep.subr.bf16.mxu0 %v1066
    %1750 = vmatpush1.bf16.msra.mxu0 %v1065
    %1751 = vmatprep.subr.bf16.mxu0 %v1070
    %1752 = vmatpush1.bf16.msra.mxu0 %v1069
    %1753 = vmatprep.subr.bf16.mxu0 %v1074
    %1754 = vmatpush1.bf16.msra.mxu0 %v1073
    %1755 = vmatprep.subr.bf16.mxu0 %v1078
    %1756 = vmatpush1.bf16.msra.mxu0 %v1077
    %1757 = vmatprep.subr.bf16.mxu0 %v1082
    %1758 = vmatpush1.bf16.msra.mxu0 %v1081
    %1759 = vmatprep.subr.bf16.mxu0 %v1086
    %1760 = vmatpush1.bf16.msra.mxu0 %v1085
    %1761 = vmatprep.mubr.bf16.mxu0 %v128
    %1762 = vmatmul.mubr.bf16.gmra.mrb[0].mxu0 %v127
    %v1763 = vpop.f32.mrb[0].mxu0
    %v1764 = vadd.f32 %v1691, %v1763
    %v1765 = vpop.f32.mrb[0].mxu0
    %v1766 = vadd.f32 %v1693, %v1765
    %v1767 = vpop.f32.mrb[0].mxu0
    %v1768 = vadd.f32 %v1695, %v1767
    %v1769 = vpop.f32.mrb[0].mxu0
    %v1770 = vadd.f32 %v1697, %v1769
    %1771 = vmatprep.mubr.bf16.mxu0 %v135
    %1772 = vmatmul.mubr.bf16.gmra.mrb[0].mxu0 %v134
    %v1773 = vpop.f32.mrb[0].mxu0
    %v1774 = vadd.f32 %v1701, %v1773
    %v1775 = vpop.f32.mrb[0].mxu0
    %v1776 = vadd.f32 %v1703, %v1775
    %v1777 = vpop.f32.mrb[0].mxu0
    %v1778 = vadd.f32 %v1705, %v1777
    %v1779 = vpop.f32.mrb[0].mxu0
    %v1780 = vadd.f32 %v1707, %v1779
    %1781 = vmatprep.mubr.bf16.mxu0 %v142
    %1782 = vmatmul.mubr.bf16.gmra.mrb[0].mxu0 %v141
    %v1783 = vpop.f32.mrb[0].mxu0
    %v1784 = vadd.f32 %v1711, %v1783
    %v1785 = vpop.f32.mrb[0].mxu0
    %v1786 = vadd.f32 %v1713, %v1785
    %v1787 = vpop.f32.mrb[0].mxu0
    %v1788 = vadd.f32 %v1715, %v1787
    %v1789 = vpop.f32.mrb[0].mxu0
    %v1790 = vadd.f32 %v1717, %v1789
    %1791 = vmatprep.mubr.bf16.mxu0 %v149
    %1792 = vmatmul.mubr.bf16.gmra.mrb[0].mxu0 %v148
    %v1793 = vpop.f32.mrb[0].mxu0
    %v1794 = vadd.f32 %v1721, %v1793
    %v1795 = vpop.f32.mrb[0].mxu0
    %v1796 = vadd.f32 %v1723, %v1795
    %v1797 = vpop.f32.mrb[0].mxu0
    %v1798 = vadd.f32 %v1725, %v1797
    %v1799 = vpop.f32.mrb[0].mxu0
    %v1800 = vadd.f32 %v1727, %v1799
    %1801 = vdwg.mxu0
    %1802 = vmatprep.subr.bf16.mxu0 %v1090
    %1803 = vmatpush1.bf16.msra.mxu0 %v1089
    %1804 = vmatprep.subr.bf16.mxu0 %v1094
    %1805 = vmatpush1.bf16.msra.mxu0 %v1093
    %1806 = vmatprep.subr.bf16.mxu0 %v1098
    %1807 = vmatpush1.bf16.msra.mxu0 %v1097
    %1808 = vmatprep.subr.bf16.mxu0 %v1102
    %1809 = vmatpush1.bf16.msra.mxu0 %v1101
    %1810 = vmatprep.subr.bf16.mxu0 %v1106
    %1811 = vmatpush1.bf16.msra.mxu0 %v1105
    %1812 = vmatprep.subr.bf16.mxu0 %v1110
    %1813 = vmatpush1.bf16.msra.mxu0 %v1109
    %1814 = vmatprep.subr.bf16.mxu0 %v1114
    %1815 = vmatpush1.bf16.msra.mxu0 %v1113
    %1816 = vmatprep.subr.bf16.mxu0 %v1118
    %1817 = vmatpush1.bf16.msra.mxu0 %v1117
    %1818 = vmatprep.subr.bf16.mxu0 %v1122
    %1819 = vmatpush1.bf16.msra.mxu0 %v1121
    %1820 = vmatprep.subr.bf16.mxu0 %v1126
    %1821 = vmatpush1.bf16.msra.mxu0 %v1125
    %1822 = vmatprep.subr.bf16.mxu0 %v1130
    %1823 = vmatpush1.bf16.msra.mxu0 %v1129
    %1824 = vmatprep.subr.bf16.mxu0 %v1134
    %1825 = vmatpush1.bf16.msra.mxu0 %v1133
    %1826 = vmatprep.subr.bf16.mxu0 %v1138
    %1827 = vmatpush1.bf16.msra.mxu0 %v1137
    %1828 = vmatprep.subr.bf16.mxu0 %v1142
    %1829 = vmatpush1.bf16.msra.mxu0 %v1141
    %1830 = vmatprep.subr.bf16.mxu0 %v1146
    %1831 = vmatpush1.bf16.msra.mxu0 %v1145
    %1832 = vmatprep.subr.bf16.mxu0 %v1150
    %1833 = vmatpush1.bf16.msra.mxu0 %v1149
    %1834 = vmatprep.mubr.bf16.mxu0 %v130
    %1835 = vmatmul.mubr.bf16.gmra.mrb[0].mxu0 %v129
    %v1836 = vpop.f32.mrb[0].mxu0
    %v1837 = vadd.f32 %v1764, %v1836
    %v1838 = vpop.f32.mrb[0].mxu0
    %v1839 = vadd.f32 %v1766, %v1838
    %v1840 = vpop.f32.mrb[0].mxu0
    %v1841 = vadd.f32 %v1768, %v1840
    %v1842 = vpop.f32.mrb[0].mxu0
    %v1843 = vadd.f32 %v1770, %v1842
    %1844 = vmatprep.mubr.bf16.mxu0 %v137
    %1845 = vmatmul.mubr.bf16.gmra.mrb[0].mxu0 %v136
    %v1846 = vpop.f32.mrb[0].mxu0
    %v1847 = vadd.f32 %v1774, %v1846
    %v1848 = vpop.f32.mrb[0].mxu0
    %v1849 = vadd.f32 %v1776, %v1848
    %v1850 = vpop.f32.mrb[0].mxu0
    %v1851 = vadd.f32 %v1778, %v1850
    %v1852 = vpop.f32.mrb[0].mxu0
    %v1853 = vadd.f32 %v1780, %v1852
    %1854 = vmatprep.mubr.bf16.mxu0 %v144
    %1855 = vmatmul.mubr.bf16.gmra.mrb[0].mxu0 %v143
    %v1856 = vpop.f32.mrb[0].mxu0
    %v1857 = vadd.f32 %v1784, %v1856
    %v1858 = vpop.f32.mrb[0].mxu0
    %v1859 = vadd.f32 %v1786, %v1858
    %v1860 = vpop.f32.mrb[0].mxu0
    %v1861 = vadd.f32 %v1788, %v1860
    %v1862 = vpop.f32.mrb[0].mxu0
    %v1863 = vadd.f32 %v1790, %v1862
    %1864 = vmatprep.mubr.bf16.mxu0 %v151
    %1865 = vmatmul.mubr.bf16.gmra.mrb[0].mxu0 %v150
    %v1866 = vpop.f32.mrb[0].mxu0
    %v1867 = vadd.f32 %v1794, %v1866
    %v1868 = vpop.f32.mrb[0].mxu0
    %v1869 = vadd.f32 %v1796, %v1868
    %v1870 = vpop.f32.mrb[0].mxu0
    %v1871 = vadd.f32 %v1798, %v1870
    %v1872 = vpop.f32.mrb[0].mxu0
    %v1873 = vadd.f32 %v1800, %v1872
    %1874 = vdwg.mxu0
    %1875 = vmatprep.subr.bf16.mxu0 %v1154
    %1876 = vmatpush1.bf16.msra.mxu0 %v1153
    %1877 = vmatprep.subr.bf16.mxu0 0
    %1878 = vmatpush1.bf16.msra.mxu0 0
    %1879 = vmatprep.subr.bf16.mxu0 0
    %1880 = vmatpush1.bf16.msra.mxu0 0
    %1881 = vmatprep.subr.bf16.mxu0 0
    %1882 = vmatpush1.bf16.msra.mxu0 0
    %1883 = vmatprep.subr.bf16.mxu0 0
    %1884 = vmatpush1.bf16.msra.mxu0 0
    %1885 = vmatprep.subr.bf16.mxu0 0
    %1886 = vmatpush1.bf16.msra.mxu0 0
    %1887 = vmatprep.subr.bf16.mxu0 0
    %1888 = vmatpush1.bf16.msra.mxu0 0
    %1889 = vmatprep.subr.bf16.mxu0 0
    %1890 = vmatpush1.bf16.msra.mxu0 0
    %1891 = vmatprep.subr.bf16.mxu0 0
    %1892 = vmatpush1.bf16.msra.mxu0 0
    %1893 = vmatprep.subr.bf16.mxu0 0
    %1894 = vmatpush1.bf16.msra.mxu0 0
    %1895 = vmatprep.subr.bf16.mxu0 0
    %1896 = vmatpush1.bf16.msra.mxu0 0
    %1897 = vmatprep.subr.bf16.mxu0 0
    %1898 = vmatpush1.bf16.msra.mxu0 0
    %1899 = vmatprep.subr.bf16.mxu0 0
    %1900 = vmatpush1.bf16.msra.mxu0 0
    %1901 = vmatprep.subr.bf16.mxu0 0
    %1902 = vmatpush1.bf16.msra.mxu0 0
    %1903 = vmatprep.subr.bf16.mxu0 0
    %1904 = vmatpush1.bf16.msra.mxu0 0
    %1905 = vmatprep.subr.bf16.mxu0 0
    %1906 = vmatpush1.bf16.msra.mxu0 0
    %1907 = vmatprep.mubr.bf16.mxu0 0
    %1908 = vmatmul.mubr.bf16.gmra.mrb[0].mxu0 %v1353
    %v1909 = vpop.f32.mrb[0].mxu0
    %v1910 = vadd.f32 %v1837, %v1909
    %v1911 = vpop.f32.mrb[0].mxu0
    %v1912 = vadd.f32 %v1839, %v1911
    %v1913 = vpop.f32.mrb[0].mxu0
    %v1914 = vadd.f32 %v1841, %v1913
    %v1915 = vpop.f32.mrb[0].mxu0
    %v1916 = vadd.f32 %v1843, %v1915
    %1917 = vmatprep.mubr.bf16.mxu0 0
    %1918 = vmatmul.mubr.bf16.gmra.mrb[0].mxu0 %v1356
    %v1919 = vpop.f32.mrb[0].mxu0
    %v1920 = vadd.f32 %v1847, %v1919
    %v1921 = vpop.f32.mrb[0].mxu0
    %v1922 = vadd.f32 %v1849, %v1921
    %v1923 = vpop.f32.mrb[0].mxu0
    %v1924 = vadd.f32 %v1851, %v1923
    %v1925 = vpop.f32.mrb[0].mxu0
    %v1926 = vadd.f32 %v1853, %v1925
    %1927 = vmatprep.mubr.bf16.mxu0 0
    %1928 = vmatmul.mubr.bf16.gmra.mrb[0].mxu0 %v1359
    %v1929 = vpop.f32.mrb[0].mxu0
    %v1930 = vadd.f32 %v1857, %v1929
    %v1931 = vpop.f32.mrb[0].mxu0
    %v1932 = vadd.f32 %v1859, %v1931
    %v1933 = vpop.f32.mrb[0].mxu0
    %v1934 = vadd.f32 %v1861, %v1933
    %v1935 = vpop.f32.mrb[0].mxu0
    %v1936 = vadd.f32 %v1863, %v1935
    %1937 = vmatprep.mubr.bf16.mxu0 0
    %1938 = vmatmul.mubr.bf16.gmra.mrb[0].mxu0 %v1362
    %v1939 = vpop.f32.mrb[0].mxu0
    %v1940 = vadd.f32 %v1867, %v1939
    %v1941 = vpop.f32.mrb[0].mxu0
    %v1942 = vadd.f32 %v1869, %v1941
    %v1943 = vpop.f32.mrb[0].mxu0
    %v1944 = vadd.f32 %v1871, %v1943
    %v1945 = vpop.f32.mrb[0].mxu0
    %v1946 = vadd.f32 %v1873, %v1945
    %1947 = vdwg.mxu0
    %v1948 = vmul.f32 %v1618, 0.2
    %v1949 = vmul.f32 %v1620, 0.2
    %v1950 = vmul.f32 %v1910, 0.2
    %v1951 = vmul.f32 %v1912, 0.2
    %v1952 = vmul.f32 %v1622, 0.2
    %v1953 = vmul.f32 %v1624, 0.2
    %v1954 = vmul.f32 %v1914, 0.2
    %v1955 = vmul.f32 %v1916, 0.2
    %v1956 = vmul.f32 %v1628, 0.2
    %v1957 = vmul.f32 %v1630, 0.2
    %v1958 = vmul.f32 %v1920, 0.2
    %v1959 = vmul.f32 %v1922, 0.2
    %v1960 = vmul.f32 %v1632, 0.2
    %v1961 = vmul.f32 %v1634, 0.2
    %v1962 = vmul.f32 %v1924, 0.2
    %v1963 = vmul.f32 %v1926, 0.2
    %v1964 = vmul.f32 %v1638, 0.2
    %v1965 = vmul.f32 %v1640, 0.2
    %v1966 = vmul.f32 %v1930, 0.2
    %v1967 = vmul.f32 %v1932, 0.2
    %v1968 = vmul.f32 %v1642, 0.2
    %v1969 = vmul.f32 %v1644, 0.2
    %v1970 = vmul.f32 %v1934, 0.2
    %v1971 = vmul.f32 %v1936, 0.2
    %v1972 = vmul.f32 %v1648, 0.2
    %v1973 = vmul.f32 %v1650, 0.2
    %v1974 = vmul.f32 %v1940, 0.2
    %v1975 = vmul.f32 %v1942, 0.2
    %v1976 = vmul.f32 %v1652, 0.2
    %v1977 = vmul.f32 %v1654, 0.2
    %v1978 = vmul.f32 %v1944, 0.2
    %v1979 = vmul.f32 %v1946, 0.2
    %v1980 = vmax.f32 %v1618, %v1948
    %v1981 = vmax.f32 %v1620, %v1949
    %v1982 = vmax.f32 %v1910, %v1950
    %v1983 = vmax.f32 %v1912, %v1951
    %v1984 = vmax.f32 %v1622, %v1952
    %v1985 = vmax.f32 %v1624, %v1953
    %v1986 = vmax.f32 %v1914, %v1954
    %v1987 = vmax.f32 %v1916, %v1955
    %v1988 = vmax.f32 %v1628, %v1956
    %v1989 = vmax.f32 %v1630, %v1957
    %v1990 = vmax.f32 %v1920, %v1958
    %v1991 = vmax.f32 %v1922, %v1959
    %v1992 = vmax.f32 %v1632, %v1960
    %v1993 = vmax.f32 %v1634, %v1961
    %v1994 = vmax.f32 %v1924, %v1962
    %v1995 = vmax.f32 %v1926, %v1963
    %v1996 = vmax.f32 %v1638, %v1964
    %v1997 = vmax.f32 %v1640, %v1965
    %v1998 = vmax.f32 %v1930, %v1966
    %v1999 = vmax.f32 %v1932, %v1967
    %v2000 = vmax.f32 %v1642, %v1968
    %v2001 = vmax.f32 %v1644, %v1969
    %v2002 = vmax.f32 %v1934, %v1970
    %v2003 = vmax.f32 %v1936, %v1971
    %v2004 = vmax.f32 %v1648, %v1972
    %v2005 = vmax.f32 %v1650, %v1973
    %v2006 = vmax.f32 %v1940, %v1974
    %v2007 = vmax.f32 %v1942, %v1975
    %v2008 = vmax.f32 %v1652, %v1976
    %v2009 = vmax.f32 %v1654, %v1977
    %v2010 = vmax.f32 %v1944, %v1978
    %v2011 = vmax.f32 %v1946, %v1979
    %v2012 = vpack.c.bf16 %v1984, %v1980
    %v2013 = vpack.c.bf16 %v1985, %v1981
    %v2014 = vpack.c.bf16 %v1986, %v1982
    %v2015 = vpack.c.bf16 %v1987, %v1983
    %v2016 = vpack.c.bf16 %v1992, %v1988
    %v2017 = vpack.c.bf16 %v1993, %v1989
    %v2018 = vpack.c.bf16 %v1994, %v1990
    %v2019 = vpack.c.bf16 %v1995, %v1991
    %v2020 = vpack.c.bf16 %v2000, %v1996
    %v2021 = vpack.c.bf16 %v2001, %v1997
    %v2022 = vpack.c.bf16 %v2002, %v1998
    %v2023 = vpack.c.bf16 %v2003, %v1999
    %v2024 = vpack.c.bf16 %v2008, %v2004
    %v2025 = vpack.c.bf16 %v2009, %v2005
    %v2026 = vpack.c.bf16 %v2010, %v2006
    %v2027 = vpack.c.bf16 %v2011, %v2007
    %v2028 = vld [vmem:[#allocation7] sm:$0xff]
    %v2029 = vld [vmem:[#allocation7 + $0x8] sm:$0xff]
    %v2030 = vld [vmem:[#allocation7 + $0x10] sm:$0xff]
    %v2031 = vld [vmem:[#allocation7 + $0x18] sm:$0xff]
    %v2032 = vld [vmem:[#allocation7 + $0x20] sm:$0xff]
    %v2033 = vld [vmem:[#allocation7 + $0x28] sm:$0xff]
    %v2034 = vld [vmem:[#allocation7 + $0x30] sm:$0xff]
    %v2035 = vld [vmem:[#allocation7 + $0x38] sm:$0xff]
    %v2036 = vld [vmem:[#allocation7 + $0x40] sm:$0xff]
    %v2037 = vld [vmem:[#allocation7 + $0x48] sm:$0xff]
    %v2038 = vld [vmem:[#allocation7 + $0x50] sm:$0xff]
    %v2039 = vld [vmem:[#allocation7 + $0x58] sm:$0xff]
    %v2040 = vld [vmem:[#allocation7 + $0x60] sm:$0xff]
    %v2041 = vld [vmem:[#allocation7 + $0x68] sm:$0xff]
    %v2042 = vld [vmem:[#allocation7 + $0x70] sm:$0xff]
    %v2043 = vld [vmem:[#allocation7 + $0x78] sm:$0xff]
    %v2044 = vld [vmem:[#allocation7 + $0x80] sm:$0xff]
    %v2045 = vld [vmem:[#allocation7 + $0x88] sm:$0xff]
    %v2046 = vld [vmem:[#allocation7 + $0x90] sm:$0xff]
    %v2047 = vld [vmem:[#allocation7 + $0x98] sm:$0xff]
    %v2048 = vld [vmem:[#allocation7 + $0xa0] sm:$0xff]
    %v2049 = vld [vmem:[#allocation7 + $0xa8] sm:$0xff]
    %v2050 = vld [vmem:[#allocation7 + $0xb0] sm:$0xff]
    %v2051 = vld [vmem:[#allocation7 + $0xb8] sm:$0xff]
    %v2052 = vld [vmem:[#allocation7 + $0xc0] sm:$0xff]
    %v2053 = vld [vmem:[#allocation7 + $0xc8] sm:$0xff]
    %v2054 = vld [vmem:[#allocation7 + $0xd0] sm:$0xff]
    %v2055 = vld [vmem:[#allocation7 + $0xd8] sm:$0xff]
    %v2056 = vld [vmem:[#allocation7 + $0xe0] sm:$0xff]
    %v2057 = vld [vmem:[#allocation7 + $0xe8] sm:$0xff]
    %v2058 = vld [vmem:[#allocation7 + $0xf0] sm:$0xff]
    %v2059 = vld [vmem:[#allocation7 + $0xf8] sm:$0xff]
    %v2060 = vld [vmem:[#allocation7 + $0x100] sm:$0xff]
    %v2061 = vld [vmem:[#allocation7 + $0x108] sm:$0xff]
    %v2062 = vld [vmem:[#allocation7 + $0x110] sm:$0xff]
    %v2063 = vld [vmem:[#allocation7 + $0x118] sm:$0xff]
    %v2064 = vld [vmem:[#allocation7 + $0x120] sm:$0xff]
    %v2065 = vld [vmem:[#allocation7 + $0x128] sm:$0xff]
    %v2066 = vld [vmem:[#allocation7 + $0x130] sm:$0xff]
    %v2067 = vld [vmem:[#allocation7 + $0x138] sm:$0xff]
    %v2068 = vld [vmem:[#allocation7 + $0x140] sm:$0xff]
    %v2069 = vld [vmem:[#allocation7 + $0x148] sm:$0xff]
    %v2070 = vld [vmem:[#allocation7 + $0x150] sm:$0xff]
    %v2071 = vld [vmem:[#allocation7 + $0x158] sm:$0xff]
    %v2072 = vld [vmem:[#allocation7 + $0x160] sm:$0xff]
    %v2073 = vld [vmem:[#allocation7 + $0x168] sm:$0xff]
    %v2074 = vld [vmem:[#allocation7 + $0x170] sm:$0xff]
    %v2075 = vld [vmem:[#allocation7 + $0x178] sm:$0xff]
    %v2076 = vld [vmem:[#allocation7 + $0x180] sm:$0xff]
    %v2077 = vld [vmem:[#allocation7 + $0x188] sm:$0xff]
    %v2078 = vld [vmem:[#allocation7 + $0x190] sm:$0xff]
    %v2079 = vld [vmem:[#allocation7 + $0x198] sm:$0xff]
    %v2080 = vld [vmem:[#allocation7 + $0x1a0] sm:$0xff]
    %v2081 = vld [vmem:[#allocation7 + $0x1a8] sm:$0xff]
    %v2082 = vld [vmem:[#allocation7 + $0x1b0] sm:$0xff]
    %v2083 = vld [vmem:[#allocation7 + $0x1b8] sm:$0xff]
    %v2084 = vld [vmem:[#allocation7 + $0x1c0] sm:$0xff]
    %v2085 = vld [vmem:[#allocation7 + $0x1c8] sm:$0xff]
    %v2086 = vld [vmem:[#allocation7 + $0x1d0] sm:$0xff]
    %v2087 = vld [vmem:[#allocation7 + $0x1d8] sm:$0xff]
    %v2088 = vld [vmem:[#allocation7 + $0x1e0] sm:$0xff]
    %v2089 = vld [vmem:[#allocation7 + $0x1e8] sm:$0xff]
    %v2090 = vld [vmem:[#allocation7 + $0x1f0] sm:$0xff]
    %v2091 = vld [vmem:[#allocation7 + $0x1f8] sm:$0xff]
    %v2092 = vld [vmem:[%s4] sm:$0x3]
    %v2094 = vlaneseq
    %v2095 = vshrl.u32 %v2094, 7
    %v2096 = vsub.s32 0, %v2095
    %v2097 = vrot.slane %v2092, %v2096
    %v2098 = vlaneseq
    %v2099 = vshrl.u32 %v2098, 7
    %v2100 = vsub.s32 1, %v2099
    %v2101 = vrot.slane %v2092, %v2100
    %v2168 = vunpack.c.l.b16 %v2028
    %v2169 = vunpack.c.h.b16 %v2028
    %v2170 = vunpack.c.l.b16 %v2029
    %v2171 = vunpack.c.h.b16 %v2029
    %v2172 = vunpack.c.l.b16 %v2030
    %v2173 = vunpack.c.h.b16 %v2030
    %v2174 = vunpack.c.l.b16 %v2031
    %v2175 = vunpack.c.h.b16 %v2031
    %v2176 = vunpack.c.l.b16 %v2032
    %v2177 = vunpack.c.h.b16 %v2032
    %v2178 = vunpack.c.l.b16 %v2033
    %v2179 = vunpack.c.h.b16 %v2033
    %v2180 = vunpack.c.l.b16 %v2034
    %v2181 = vunpack.c.h.b16 %v2034
    %v2182 = vunpack.c.l.b16 %v2035
    %v2183 = vunpack.c.h.b16 %v2035
    %v2184 = vunpack.c.l.b16 %v2036
    %v2185 = vunpack.c.h.b16 %v2036
    %v2186 = vunpack.c.l.b16 %v2037
    %v2187 = vunpack.c.h.b16 %v2037
    %v2188 = vunpack.c.l.b16 %v2038
    %v2189 = vunpack.c.h.b16 %v2038
    %v2190 = vunpack.c.l.b16 %v2039
    %v2191 = vunpack.c.h.b16 %v2039
    %v2192 = vunpack.c.l.b16 %v2040
    %v2193 = vunpack.c.h.b16 %v2040
    %v2194 = vunpack.c.l.b16 %v2041
    %v2195 = vunpack.c.h.b16 %v2041
    %v2196 = vunpack.c.l.b16 %v2042
    %v2197 = vunpack.c.h.b16 %v2042
    %v2198 = vunpack.c.l.b16 %v2043
    %v2199 = vunpack.c.h.b16 %v2043
    %v2200 = vunpack.c.l.b16 %v2044
    %v2201 = vunpack.c.h.b16 %v2044
    %v2202 = vunpack.c.l.b16 %v2045
    %v2203 = vunpack.c.h.b16 %v2045
    %v2204 = vunpack.c.l.b16 %v2046
    %v2205 = vunpack.c.h.b16 %v2046
    %v2206 = vunpack.c.l.b16 %v2047
    %v2207 = vunpack.c.h.b16 %v2047
    %v2208 = vunpack.c.l.b16 %v2048
    %v2209 = vunpack.c.h.b16 %v2048
    %v2210 = vunpack.c.l.b16 %v2049
    %v2211 = vunpack.c.h.b16 %v2049
    %v2212 = vunpack.c.l.b16 %v2050
    %v2213 = vunpack.c.h.b16 %v2050
    %v2214 = vunpack.c.l.b16 %v2051
    %v2215 = vunpack.c.h.b16 %v2051
    %v2216 = vunpack.c.l.b16 %v2052
    %v2217 = vunpack.c.h.b16 %v2052
    %v2218 = vunpack.c.l.b16 %v2053
    %v2219 = vunpack.c.h.b16 %v2053
    %v2220 = vunpack.c.l.b16 %v2054
    %v2221 = vunpack.c.h.b16 %v2054
    %v2222 = vunpack.c.l.b16 %v2055
    %v2223 = vunpack.c.h.b16 %v2055
    %v2224 = vunpack.c.l.b16 %v2056
    %v2225 = vunpack.c.h.b16 %v2056
    %v2226 = vunpack.c.l.b16 %v2057
    %v2227 = vunpack.c.h.b16 %v2057
    %v2228 = vunpack.c.l.b16 %v2058
    %v2229 = vunpack.c.h.b16 %v2058
    %v2230 = vunpack.c.l.b16 %v2059
    %v2231 = vunpack.c.h.b16 %v2059
    %v2232 = vunpack.c.l.b16 %v2060
    %v2233 = vunpack.c.h.b16 %v2060
    %v2234 = vunpack.c.l.b16 %v2061
    %v2235 = vunpack.c.h.b16 %v2061
    %v2236 = vunpack.c.l.b16 %v2062
    %v2237 = vunpack.c.h.b16 %v2062
    %v2238 = vunpack.c.l.b16 %v2063
    %v2239 = vunpack.c.h.b16 %v2063
    %v2240 = vunpack.c.l.b16 %v2064
    %v2241 = vunpack.c.h.b16 %v2064
    %v2242 = vunpack.c.l.b16 %v2065
    %v2243 = vunpack.c.h.b16 %v2065
    %v2244 = vunpack.c.l.b16 %v2066
    %v2245 = vunpack.c.h.b16 %v2066
    %v2246 = vunpack.c.l.b16 %v2067
    %v2247 = vunpack.c.h.b16 %v2067
    %v2248 = vunpack.c.l.b16 %v2068
    %v2249 = vunpack.c.h.b16 %v2068
    %v2250 = vunpack.c.l.b16 %v2069
    %v2251 = vunpack.c.h.b16 %v2069
    %v2252 = vunpack.c.l.b16 %v2070
    %v2253 = vunpack.c.h.b16 %v2070
    %v2254 = vunpack.c.l.b16 %v2071
    %v2255 = vunpack.c.h.b16 %v2071
    %v2256 = vunpack.c.l.b16 %v2072
    %v2257 = vunpack.c.h.b16 %v2072
    %v2258 = vunpack.c.l.b16 %v2073
    %v2259 = vunpack.c.h.b16 %v2073
    %v2260 = vunpack.c.l.b16 %v2074
    %v2261 = vunpack.c.h.b16 %v2074
    %v2262 = vunpack.c.l.b16 %v2075
    %v2263 = vunpack.c.h.b16 %v2075
    %v2264 = vunpack.c.l.b16 %v2076
    %v2265 = vunpack.c.h.b16 %v2076
    %v2266 = vunpack.c.l.b16 %v2077
    %v2267 = vunpack.c.h.b16 %v2077
    %v2268 = vunpack.c.l.b16 %v2078
    %v2269 = vunpack.c.h.b16 %v2078
    %v2270 = vunpack.c.l.b16 %v2079
    %v2271 = vunpack.c.h.b16 %v2079
    %v2272 = vunpack.c.l.b16 %v2080
    %v2273 = vunpack.c.h.b16 %v2080
    %v2274 = vunpack.c.l.b16 %v2081
    %v2275 = vunpack.c.h.b16 %v2081
    %v2276 = vunpack.c.l.b16 %v2082
    %v2277 = vunpack.c.h.b16 %v2082
    %v2278 = vunpack.c.l.b16 %v2083
    %v2279 = vunpack.c.h.b16 %v2083
    %v2280 = vunpack.c.l.b16 %v2084
    %v2281 = vunpack.c.h.b16 %v2084
    %v2282 = vunpack.c.l.b16 %v2085
    %v2283 = vunpack.c.h.b16 %v2085
    %v2284 = vunpack.c.l.b16 %v2086
    %v2285 = vunpack.c.h.b16 %v2086
    %v2286 = vunpack.c.l.b16 %v2087
    %v2287 = vunpack.c.h.b16 %v2087
    %v2288 = vunpack.c.l.b16 %v2088
    %v2289 = vunpack.c.h.b16 %v2088
    %v2290 = vunpack.c.l.b16 %v2089
    %v2291 = vunpack.c.h.b16 %v2089
    %v2292 = vunpack.c.l.b16 %v2090
    %v2293 = vunpack.c.h.b16 %v2090
    %v2294 = vunpack.c.l.b16 %v2091
    %v2295 = vunpack.c.h.b16 %v2091
    %v2296 = vpack.c.b16 %v2170, %v2168
    %v2297 = vpack.c.b16 %v2171, %v2169
    %v2298 = vpack.c.b16 %v2174, %v2172
    %v2299 = vpack.c.b16 %v2175, %v2173
    %v2300 = vpack.c.b16 %v2178, %v2176
    %v2301 = vpack.c.b16 %v2179, %v2177
    %v2302 = vpack.c.b16 %v2182, %v2180
    %v2303 = vpack.c.b16 %v2183, %v2181
    %v2304 = vpack.c.b16 %v2186, %v2184
    %v2305 = vpack.c.b16 %v2187, %v2185
    %v2306 = vpack.c.b16 %v2190, %v2188
    %v2307 = vpack.c.b16 %v2191, %v2189
    %v2308 = vpack.c.b16 %v2194, %v2192
    %v2309 = vpack.c.b16 %v2195, %v2193
    %v2310 = vpack.c.b16 %v2198, %v2196
    %v2311 = vpack.c.b16 %v2199, %v2197
    %v2312 = vpack.c.b16 %v2202, %v2200
    %v2313 = vpack.c.b16 %v2203, %v2201
    %v2314 = vpack.c.b16 %v2206, %v2204
    %v2315 = vpack.c.b16 %v2207, %v2205
    %v2316 = vpack.c.b16 %v2210, %v2208
    %v2317 = vpack.c.b16 %v2211, %v2209
    %v2318 = vpack.c.b16 %v2214, %v2212
    %v2319 = vpack.c.b16 %v2215, %v2213
    %v2320 = vpack.c.b16 %v2218, %v2216
    %v2321 = vpack.c.b16 %v2219, %v2217
    %v2322 = vpack.c.b16 %v2222, %v2220
    %v2323 = vpack.c.b16 %v2223, %v2221
    %v2324 = vpack.c.b16 %v2226, %v2224
    %v2325 = vpack.c.b16 %v2227, %v2225
    %v2326 = vpack.c.b16 %v2230, %v2228
    %v2327 = vpack.c.b16 %v2231, %v2229
    %v2328 = vpack.c.b16 %v2234, %v2232
    %v2329 = vpack.c.b16 %v2235, %v2233
    %v2330 = vpack.c.b16 %v2238, %v2236
    %v2331 = vpack.c.b16 %v2239, %v2237
    %v2332 = vpack.c.b16 %v2242, %v2240
    %v2333 = vpack.c.b16 %v2243, %v2241
    %v2334 = vpack.c.b16 %v2246, %v2244
    %v2335 = vpack.c.b16 %v2247, %v2245
    %v2336 = vpack.c.b16 %v2250, %v2248
    %v2337 = vpack.c.b16 %v2251, %v2249
    %v2338 = vpack.c.b16 %v2254, %v2252
    %v2339 = vpack.c.b16 %v2255, %v2253
    %v2340 = vpack.c.b16 %v2258, %v2256
    %v2341 = vpack.c.b16 %v2259, %v2257
    %v2342 = vpack.c.b16 %v2262, %v2260
    %v2343 = vpack.c.b16 %v2263, %v2261
    %v2344 = vpack.c.b16 %v2266, %v2264
    %v2345 = vpack.c.b16 %v2267, %v2265
    %v2346 = vpack.c.b16 %v2270, %v2268
    %v2347 = vpack.c.b16 %v2271, %v2269
    %v2348 = vpack.c.b16 %v2274, %v2272
    %v2349 = vpack.c.b16 %v2275, %v2273
    %v2350 = vpack.c.b16 %v2278, %v2276
    %v2351 = vpack.c.b16 %v2279, %v2277
    %v2352 = vpack.c.b16 %v2282, %v2280
    %v2353 = vpack.c.b16 %v2283, %v2281
    %v2354 = vpack.c.b16 %v2286, %v2284
    %v2355 = vpack.c.b16 %v2287, %v2285
    %v2356 = vpack.c.b16 %v2290, %v2288
    %v2357 = vpack.c.b16 %v2291, %v2289
    %v2358 = vpack.c.b16 %v2294, %v2292
    %v2359 = vpack.c.b16 %v2295, %v2293
    %2424 = vmatprep.subr.bf16.mxu0 %v2297
    %2425 = vmatpush1.bf16.msra.mxu0 %v2296
    %2426 = vmatprep.subr.bf16.mxu0 %v2299
    %2427 = vmatpush1.bf16.msra.mxu0 %v2298
    %2428 = vmatprep.subr.bf16.mxu0 %v2301
    %2429 = vmatpush1.bf16.msra.mxu0 %v2300
    %2430 = vmatprep.subr.bf16.mxu0 %v2303
    %2431 = vmatpush1.bf16.msra.mxu0 %v2302
    %2432 = vmatprep.subr.bf16.mxu0 %v2305
    %2433 = vmatpush1.bf16.msra.mxu0 %v2304
    %2434 = vmatprep.subr.bf16.mxu0 %v2307
    %2435 = vmatpush1.bf16.msra.mxu0 %v2306
    %2436 = vmatprep.subr.bf16.mxu0 %v2309
    %2437 = vmatpush1.bf16.msra.mxu0 %v2308
    %2438 = vmatprep.subr.bf16.mxu0 %v2311
    %2439 = vmatpush1.bf16.msra.mxu0 %v2310
    %2440 = vmatprep.subr.bf16.mxu0 %v2313
    %2441 = vmatpush1.bf16.msra.mxu0 %v2312
    %2442 = vmatprep.subr.bf16.mxu0 %v2315
    %2443 = vmatpush1.bf16.msra.mxu0 %v2314
    %2444 = vmatprep.subr.bf16.mxu0 %v2317
    %2445 = vmatpush1.bf16.msra.mxu0 %v2316
    %2446 = vmatprep.subr.bf16.mxu0 %v2319
    %2447 = vmatpush1.bf16.msra.mxu0 %v2318
    %2448 = vmatprep.subr.bf16.mxu0 %v2321
    %2449 = vmatpush1.bf16.msra.mxu0 %v2320
    %2450 = vmatprep.subr.bf16.mxu0 %v2323
    %2451 = vmatpush1.bf16.msra.mxu0 %v2322
    %2452 = vmatprep.subr.bf16.mxu0 %v2325
    %2453 = vmatpush1.bf16.msra.mxu0 %v2324
    %2454 = vmatprep.subr.bf16.mxu0 %v2327
    %2455 = vmatpush1.bf16.msra.mxu0 %v2326
    %2456 = vmatprep.mubr.bf16.mxu0 %v2013
    %2457 = vmatmul.mubr.bf16.gmra.mrb[0].mxu0 %v2012
    %v2458 = vpop.f32.mrb[0].mxu0
    %v2459 = vadd.f32 %v2097, %v2458
    %v2460 = vpop.f32.mrb[0].mxu0
    %v2461 = vadd.f32 %v2101, %v2460
    %v2462 = vpop.f32.mrb[0].mxu0
    %v2463 = vadd.f32 %v2097, %v2462
    %v2464 = vpop.f32.mrb[0].mxu0
    %v2465 = vadd.f32 %v2101, %v2464
    %2466 = vmatprep.mubr.bf16.mxu0 %v2017
    %2467 = vmatmul.mubr.bf16.gmra.mrb[0].mxu0 %v2016
    %v2468 = vpop.f32.mrb[0].mxu0
    %v2469 = vadd.f32 %v2097, %v2468
    %v2470 = vpop.f32.mrb[0].mxu0
    %v2471 = vadd.f32 %v2101, %v2470
    %v2472 = vpop.f32.mrb[0].mxu0
    %v2473 = vadd.f32 %v2097, %v2472
    %v2474 = vpop.f32.mrb[0].mxu0
    %v2475 = vadd.f32 %v2101, %v2474
    %2476 = vmatprep.mubr.bf16.mxu0 %v2021
    %2477 = vmatmul.mubr.bf16.gmra.mrb[0].mxu0 %v2020
    %v2478 = vpop.f32.mrb[0].mxu0
    %v2479 = vadd.f32 %v2097, %v2478
    %v2480 = vpop.f32.mrb[0].mxu0
    %v2481 = vadd.f32 %v2101, %v2480
    %v2482 = vpop.f32.mrb[0].mxu0
    %v2483 = vadd.f32 %v2097, %v2482
    %v2484 = vpop.f32.mrb[0].mxu0
    %v2485 = vadd.f32 %v2101, %v2484
    %2486 = vmatprep.mubr.bf16.mxu0 %v2025
    %2487 = vmatmul.mubr.bf16.gmra.mrb[0].mxu0 %v2024
    %v2488 = vpop.f32.mrb[0].mxu0
    %v2489 = vadd.f32 %v2097, %v2488
    %v2490 = vpop.f32.mrb[0].mxu0
    %v2491 = vadd.f32 %v2101, %v2490
    %v2492 = vpop.f32.mrb[0].mxu0
    %v2493 = vadd.f32 %v2097, %v2492
    %v2494 = vpop.f32.mrb[0].mxu0
    %v2495 = vadd.f32 %v2101, %v2494
    %2496 = vdwg.mxu0
    %2497 = vmatprep.subr.bf16.mxu0 %v2329
    %2498 = vmatpush1.bf16.msra.mxu0 %v2328
    %2499 = vmatprep.subr.bf16.mxu0 %v2331
    %2500 = vmatpush1.bf16.msra.mxu0 %v2330
    %2501 = vmatprep.subr.bf16.mxu0 %v2333
    %2502 = vmatpush1.bf16.msra.mxu0 %v2332
    %2503 = vmatprep.subr.bf16.mxu0 %v2335
    %2504 = vmatpush1.bf16.msra.mxu0 %v2334
    %2505 = vmatprep.subr.bf16.mxu0 %v2337
    %2506 = vmatpush1.bf16.msra.mxu0 %v2336
    %2507 = vmatprep.subr.bf16.mxu0 %v2339
    %2508 = vmatpush1.bf16.msra.mxu0 %v2338
    %2509 = vmatprep.subr.bf16.mxu0 %v2341
    %2510 = vmatpush1.bf16.msra.mxu0 %v2340
    %2511 = vmatprep.subr.bf16.mxu0 %v2343
    %2512 = vmatpush1.bf16.msra.mxu0 %v2342
    %2513 = vmatprep.subr.bf16.mxu0 %v2345
    %2514 = vmatpush1.bf16.msra.mxu0 %v2344
    %2515 = vmatprep.subr.bf16.mxu0 %v2347
    %2516 = vmatpush1.bf16.msra.mxu0 %v2346
    %2517 = vmatprep.subr.bf16.mxu0 %v2349
    %2518 = vmatpush1.bf16.msra.mxu0 %v2348
    %2519 = vmatprep.subr.bf16.mxu0 %v2351
    %2520 = vmatpush1.bf16.msra.mxu0 %v2350
    %2521 = vmatprep.subr.bf16.mxu0 %v2353
    %2522 = vmatpush1.bf16.msra.mxu0 %v2352
    %2523 = vmatprep.subr.bf16.mxu0 %v2355
    %2524 = vmatpush1.bf16.msra.mxu0 %v2354
    %2525 = vmatprep.subr.bf16.mxu0 %v2357
    %2526 = vmatpush1.bf16.msra.mxu0 %v2356
    %2527 = vmatprep.subr.bf16.mxu0 %v2359
    %2528 = vmatpush1.bf16.msra.mxu0 %v2358
    %2529 = vmatprep.mubr.bf16.mxu0 %v2015
    %2530 = vmatmul.mubr.bf16.gmra.mrb[0].mxu0 %v2014
    %v2531 = vpop.f32.mrb[0].mxu0
    %v2532 = vadd.f32 %v2459, %v2531
    %v2533 = vpop.f32.mrb[0].mxu0
    %v2534 = vadd.f32 %v2461, %v2533
    %v2535 = vpop.f32.mrb[0].mxu0
    %v2536 = vadd.f32 %v2463, %v2535
    %v2537 = vpop.f32.mrb[0].mxu0
    %v2538 = vadd.f32 %v2465, %v2537
    %2539 = vmatprep.mubr.bf16.mxu0 %v2019
    %2540 = vmatmul.mubr.bf16.gmra.mrb[0].mxu0 %v2018
    %v2541 = vpop.f32.mrb[0].mxu0
    %v2542 = vadd.f32 %v2469, %v2541
    %v2543 = vpop.f32.mrb[0].mxu0
    %v2544 = vadd.f32 %v2471, %v2543
    %v2545 = vpop.f32.mrb[0].mxu0
    %v2546 = vadd.f32 %v2473, %v2545
    %v2547 = vpop.f32.mrb[0].mxu0
    %v2548 = vadd.f32 %v2475, %v2547
    %2549 = vmatprep.mubr.bf16.mxu0 %v2023
    %2550 = vmatmul.mubr.bf16.gmra.mrb[0].mxu0 %v2022
    %v2551 = vpop.f32.mrb[0].mxu0
    %v2552 = vadd.f32 %v2479, %v2551
    %v2553 = vpop.f32.mrb[0].mxu0
    %v2554 = vadd.f32 %v2481, %v2553
    %v2555 = vpop.f32.mrb[0].mxu0
    %v2556 = vadd.f32 %v2483, %v2555
    %v2557 = vpop.f32.mrb[0].mxu0
    %v2558 = vadd.f32 %v2485, %v2557
    %2559 = vmatprep.mubr.bf16.mxu0 %v2027
    %2560 = vmatmul.mubr.bf16.gmra.mrb[0].mxu0 %v2026
    %v2561 = vpop.f32.mrb[0].mxu0
    %v2562 = vadd.f32 %v2489, %v2561
    %v2563 = vpop.f32.mrb[0].mxu0
    %v2564 = vadd.f32 %v2491, %v2563
    %v2565 = vpop.f32.mrb[0].mxu0
    %v2566 = vadd.f32 %v2493, %v2565
    %v2567 = vpop.f32.mrb[0].mxu0
    %v2568 = vadd.f32 %v2495, %v2567
    %2569 = vdwg.mxu0
    %v2570 = vmul.f32 %v2532, 0.2
    %v2571 = vmul.f32 %v2534, 0.2
    %v2572 = vmul.f32 %v2536, 0.2
    %v2573 = vmul.f32 %v2538, 0.2
    %v2574 = vmul.f32 %v2542, 0.2
    %v2575 = vmul.f32 %v2544, 0.2
    %v2576 = vmul.f32 %v2546, 0.2
    %v2577 = vmul.f32 %v2548, 0.2
    %v2578 = vmul.f32 %v2552, 0.2
    %v2579 = vmul.f32 %v2554, 0.2
    %v2580 = vmul.f32 %v2556, 0.2
    %v2581 = vmul.f32 %v2558, 0.2
    %v2582 = vmul.f32 %v2562, 0.2
    %v2583 = vmul.f32 %v2564, 0.2
    %v2584 = vmul.f32 %v2566, 0.2
    %v2585 = vmul.f32 %v2568, 0.2
    %v2586 = vmax.f32 %v2532, %v2570
    %v2587 = vmax.f32 %v2534, %v2571
    %v2588 = vmax.f32 %v2536, %v2572
    %v2589 = vmax.f32 %v2538, %v2573
    %v2590 = vmax.f32 %v2542, %v2574
    %v2591 = vmax.f32 %v2544, %v2575
    %v2592 = vmax.f32 %v2546, %v2576
    %v2593 = vmax.f32 %v2548, %v2577
    %v2594 = vmax.f32 %v2552, %v2578
    %v2595 = vmax.f32 %v2554, %v2579
    %v2596 = vmax.f32 %v2556, %v2580
    %v2597 = vmax.f32 %v2558, %v2581
    %v2598 = vmax.f32 %v2562, %v2582
    %v2599 = vmax.f32 %v2564, %v2583
    %v2600 = vmax.f32 %v2566, %v2584
    %v2601 = vmax.f32 %v2568, %v2585
    %v2602 = vld [vmem:[%s5] sm:$0x3]
    %v2604 = vlaneseq
    %v2605 = vshrl.u32 %v2604, 7
    %v2606 = vsub.s32 0, %v2605
    %v2607 = vrot.slane %v2602, %v2606
    %v2608 = vlaneseq
    %v2609 = vshrl.u32 %v2608, 7
    %v2610 = vsub.s32 1, %v2609
    %v2611 = vrot.slane %v2602, %v2610
    %v2614 = vmul.f32 %v2586, %v2607
    %v2615 = vmul.f32 %v2587, %v2611
    %v2616 = vmul.f32 %v2588, %v2607
    %v2617 = vmul.f32 %v2589, %v2611
    %v2618 = vmul.f32 %v2590, %v2607
    %v2619 = vmul.f32 %v2591, %v2611
    %v2620 = vmul.f32 %v2592, %v2607
    %v2621 = vmul.f32 %v2593, %v2611
    %v2622 = vmul.f32 %v2594, %v2607
    %v2623 = vmul.f32 %v2595, %v2611
    %v2624 = vmul.f32 %v2596, %v2607
    %v2625 = vmul.f32 %v2597, %v2611
    %v2626 = vmul.f32 %v2598, %v2607
    %v2627 = vmul.f32 %v2599, %v2611
    %v2628 = vmul.f32 %v2600, %v2607
    %v2629 = vmul.f32 %v2601, %v2611
    %v2630 = vadd.f32 %v2614, %v2615
    %2631 = vadd.xlane.f32.xlu0 %v2630
    %v2632 = vpop.xlane.xlu0 %2631
    %v2633 = vadd.f32 %v2616, %v2617
    %2634 = vadd.xlane.f32.xlu0 %v2633
    %v2635 = vpop.xlane.xlu0 %2634
    %v2636 = vadd.f32 %v2618, %v2619
    %2637 = vadd.xlane.f32.xlu0 %v2636
    %v2638 = vpop.xlane.xlu0 %2637
    %v2639 = vadd.f32 %v2620, %v2621
    %2640 = vadd.xlane.f32.xlu0 %v2639
    %v2641 = vpop.xlane.xlu0 %2640
    %v2642 = vadd.f32 %v2622, %v2623
    %2643 = vadd.xlane.f32.xlu0 %v2642
    %v2644 = vpop.xlane.xlu0 %2643
    %v2645 = vadd.f32 %v2624, %v2625
    %2646 = vadd.xlane.f32.xlu0 %v2645
    %v2647 = vpop.xlane.xlu0 %2646
    %v2648 = vadd.f32 %v2626, %v2627
    %2649 = vadd.xlane.f32.xlu0 %v2648
    %v2650 = vpop.xlane.xlu0 %2649
    %v2651 = vadd.f32 %v2628, %v2629
    %2652 = vadd.xlane.f32.xlu0 %v2651
    %v2653 = vpop.xlane.xlu0 %2652
    %s2654 = sld [smem:[#allocation2]]
    %v2655 = vstv %s2654
    %v2656 = vadd.f32 %v2632, %v2655
    %v2657 = vadd.f32 %v2635, %v2655
    %v2658 = vadd.f32 %v2638, %v2655
    %v2659 = vadd.f32 %v2641, %v2655
    %v2660 = vadd.f32 %v2644, %v2655
    %v2661 = vadd.f32 %v2647, %v2655
    %v2662 = vadd.f32 %v2650, %v2655
    %v2663 = vadd.f32 %v2653, %v2655
    %v2664 = vmul.f32 %v2656, 0.5
    %v2665 = vmul.f32 %v2657, 0.5
    %v2666 = vmul.f32 %v2658, 0.5
    %v2667 = vmul.f32 %v2659, 0.5
    %v2668 = vmul.f32 %v2660, 0.5
    %v2669 = vmul.f32 %v2661, 0.5
    %v2670 = vmul.f32 %v2662, 0.5
    %v2671 = vmul.f32 %v2663, 0.5
    %v2672 = vtanh.pop %v2664
    %v2673 = vtanh.pop %v2665
    %v2674 = vtanh.pop %v2666
    %v2675 = vtanh.pop %v2667
    %v2676 = vtanh.pop %v2668
    %v2677 = vtanh.pop %v2669
    %v2678 = vtanh.pop %v2670
    %v2679 = vtanh.pop %v2671
    %v2680 = vadd.f32 %v2672, 1.0
    %v2681 = vadd.f32 %v2673, 1.0
    %v2682 = vadd.f32 %v2674, 1.0
    %v2683 = vadd.f32 %v2675, 1.0
    %v2684 = vadd.f32 %v2676, 1.0
    %v2685 = vadd.f32 %v2677, 1.0
    %v2686 = vadd.f32 %v2678, 1.0
    %v2687 = vadd.f32 %v2679, 1.0
    %v2688 = vmul.f32 %v2680, 0.5
    %v2689 = vmul.f32 %v2681, 0.5
    %v2690 = vmul.f32 %v2682, 0.5
    %v2691 = vmul.f32 %v2683, 0.5
    %v2692 = vmul.f32 %v2684, 0.5
    %v2693 = vmul.f32 %v2685, 0.5
    %v2694 = vmul.f32 %v2686, 0.5
    %v2695 = vmul.f32 %v2687, 0.5
    %vm2696 = vcmask 7168
    %2697 = vst.msk [vmem:[%s7] sm:$0xff] %vm2696, %v2688
    %2698 = vst.msk [vmem:[%s7 + $0x8] sm:$0xff] %vm2696, %v2689
    %2699 = vst.msk [vmem:[%s7 + $0x10] sm:$0xff] %vm2696, %v2690
    %2700 = vst.msk [vmem:[%s7 + $0x18] sm:$0xff] %vm2696, %v2691
    %2701 = vst.msk [vmem:[%s7 + $0x20] sm:$0xff] %vm2696, %v2692
    %2702 = vst.msk [vmem:[%s7 + $0x28] sm:$0xff] %vm2696, %v2693
    %2703 = vst.msk [vmem:[%s7 + $0x30] sm:$0xff] %vm2696, %v2694
    %2704 = vst.msk [vmem:[%s7 + $0x38] sm:$0xff] %vm2696, %v2695
    // Predicated region
    $region42: #{tpu_custom_call.1} parent=1 // pred_check
      _
    $region43: #{tpu_custom_call.1} parent=1 // pred_check_branch
      %2706 = sbr.rel (0) target = $region45
    $region44: #{tpu_custom_call.1} parent=1 // pred_region
      _
    $region45: #{tpu_custom_call.1} parent=1 // pred_fallthru
      _
    // Predicated region
    $region46: #{tpu_custom_call.1} parent=1 // pred_check
      _
    $region47: #{tpu_custom_call.1} parent=1 // pred_check_branch
      %2708 = sbr.rel (0) target = $region49
    $region48: #{tpu_custom_call.1} parent=1 // pred_region
      _
    $region49: #{tpu_custom_call.1} parent=1 // pred_fallthru
      _
    %2709 = vsyncpa [#allocation4], 1
    %2710 = vsyncpa [#allocation6], 1

</llo_original>
